<compile_context>
chip_gen: v7x
topology: tpu7x:2x2x1
jax: 0.10.0
libtpu: 0.0.40
codegen_flags: <defaults>
</compile_context>

<pallas_src>
import functools
import math

import jax
import jax.numpy as jnp
from jax.experimental import pallas as pl
from jax.experimental.pallas import tpu as pltpu


def _layer_norm(v, g, b, eps=1e-5):
    mu = jnp.mean(v, axis=-1, keepdims=True)
    var = jnp.mean(jnp.square(v - mu), axis=-1, keepdims=True)
    return (v - mu) * jax.lax.rsqrt(var + eps) * g + b


def imp_encoder_kernel(x_ref, wqkv_ref, wo_ref, w1_ref, w2_ref, w3_ref,
                       vd_ref, vh_ref, o_ref, act_ref, *, num_heads):
    layer = pl.program_id(1)
    n_layers = pl.num_programs(1)

    Bt, S, D = x_ref.shape
    M = Bt * S
    d_k = D // num_heads
    bf16 = jnp.bfloat16

    # Load the batch tile into the resident activation scratch at the first layer only.
    @pl.when(layer == 0)
    def _():
        act_ref[...] = x_ref[...].reshape(M, D)

    x = act_ref[...]                                   # (M, D) f32, carried across layers
    vd = vd_ref[0]                                     # (9, D)  f32 packed D-sized vectors
    vh = vh_ref[0]                                     # (6, H)  f32 packed H-sized vectors

    def matmul(a, w_ref):                              # bf16 MXU matmul, f32 accumulation
        return jnp.dot(a.astype(bf16), w_ref[0], preferred_element_type=jnp.float32)

    # ---- MultiHeadAttention (pure self-attention; key/value args are ignored) ----
    qkv = matmul(x, wqkv_ref)                          # fused Q|K|V projection -> (M, 3D)
    inv_sqrt_dk = 1.0 / math.sqrt(d_k)                 # fold scale into Q
    q3 = ((qkv[:, :D] + vd[0:1]) * inv_sqrt_dk).reshape(Bt, S, D)
    k3 = (qkv[:, D:2 * D] + vd[1:2]).reshape(Bt, S, D)
    v3 = (qkv[:, 2 * D:] + vd[2:3]).reshape(Bt, S, D)

    head_ctx = []
    for h in range(num_heads):                         # static unroll; batched over Bt
        sl = slice(h * d_k, (h + 1) * d_k)
        qh = q3[:, :, sl].astype(bf16)
        kh = k3[:, :, sl].astype(bf16)
        vh_h = v3[:, :, sl].astype(bf16)
        s = jnp.einsum('bqd,bkd->bqk', qh, kh,
                       preferred_element_type=jnp.float32)          # (Bt, S, S)
        s_max = jnp.max(s, axis=-1, keepdims=True)
        p = jnp.exp(s - s_max)
        p = p * pl.reciprocal(jnp.sum(p, axis=-1, keepdims=True), approx=True)
        c = jnp.einsum('bqk,bkd->bqd', p.astype(bf16), vh_h,
                       preferred_element_type=jnp.float32)          # (Bt, S, d_k)
        head_ctx.append(c.reshape(M, d_k))
    ctx = jnp.concatenate(head_ctx, axis=-1)           # combine_heads -> (M, D)

    attn = matmul(ctx, wo_ref) + vd[3:4]               # output_linear

    # ---- FeedForward (Dropout is identity: eval semantics) ----
    # TODO(synk): nn.Dropout(p=0.1) training-mode randomness not reproduced.
    h1 = jnp.maximum(_layer_norm(matmul(attn, w1_ref) + vh[0:1], vh[1:2], vh[2:3]), 0.0)
    h2 = jnp.maximum(_layer_norm(matmul(h1, w2_ref) + vh[3:4], vh[4:5], vh[5:6]), 0.0)
    h3 = matmul(h2, w3_ref) + vd[4:5]
    ff = _layer_norm(h3 + attn, vd[5:6], vd[6:7])      # FeedForward.norm(outs + x)

    out = _layer_norm(ff, vd[7:8], vd[8:9])            # Encoder final LayerNorm

    act_ref[...] = out                                 # carry activation to next layer

    @pl.when(layer == n_layers - 1)
    def _():
        o_ref[...] = out.reshape(Bt, S, D)


def _choose_batch_tile(B, S):
    """Largest divisor of B with <=512 rows per tile, preferring >=2 tiles (megacore)."""
    cap = max(1, 512 // max(S, 1))
    fitting = [d for d in range(1, B + 1) if B % d == 0 and d <= cap] or [1]
    two_plus = [d for d in fitting if B // d >= 2]
    return max(two_plus) if two_plus else max(fitting)


def imp_encoder_forward(x, params, *, num_heads, batch_tile=None):
    B, S, D = x.shape
    assert D % num_heads == 0, "num_heads must divide d_model"
    L, _, H = params["w1"].shape
    Bt = batch_tile if batch_tile is not None else _choose_batch_tile(B, S)
    assert B % Bt == 0
    nb = B // Bt

    act_map = lambda b, l: (b, 0, 0)    # same block across the layer axis (resident)
    lyr_map = lambda b, l: (l, 0, 0)    # stream weights layer-by-layer

    in_specs = [
        pl.BlockSpec((Bt, S, D), act_map),          # x
        pl.BlockSpec((1, D, 3 * D), lyr_map),       # w_qkv  (bf16)
        pl.BlockSpec((1, D, D), lyr_map),           # w_o    (bf16)
        pl.BlockSpec((1, D, H), lyr_map),           # w1     (bf16)
        pl.BlockSpec((1, H, H), lyr_map),           # w2     (bf16)
        pl.BlockSpec((1, H, D), lyr_map),           # w3     (bf16)
        pl.BlockSpec((1, 9, D), lyr_map),           # vecs_d (f32)
        pl.BlockSpec((1, 6, H), lyr_map),           # vecs_h (f32)
    ]
    out_spec = pl.BlockSpec((Bt, S, D), act_map)

    return pl.pallas_call(
        functools.partial(imp_encoder_kernel, num_heads=num_heads),
        out_shape=jax.ShapeDtypeStruct((B, S, D), jnp.float32),
        grid_spec=pltpu.PrefetchScalarGridSpec(
            num_scalar_prefetch=0,
            grid=(nb, L),
            in_specs=in_specs,
            out_specs=out_spec,
            scratch_shapes=[pltpu.VMEM((Bt * S, D), jnp.float32)],
        ),
        compiler_params=pltpu.CompilerParams(
            dimension_semantics=("parallel", "arbitrary"),
            vmem_limit_bytes=32 * 1024 * 1024,
        ),
    )(x, params["w_qkv"], params["w_o"], params["w1"], params["w2"],
      params["w3"], params["vecs_d"], params["vecs_h"])


# ---------------- deterministic parameter initialization (packed layout) ----------------

def _init_linear(key, fan_in, fan_out):
    kw, kb = jax.random.split(key)
    bound = 1.0 / math.sqrt(fan_in)
    w = jax.random.uniform(kw, (fan_in, fan_out), jnp.float32, -bound, bound)
    b = jax.random.uniform(kb, (fan_out,), jnp.float32, -bound, bound)
    return w, b


def _init_layer(key, d_model, scale):
    h = d_model // scale
    keys = jax.random.split(key, 7)
    wq, bq = _init_linear(keys[0], d_model, d_model)
    wk, bk = _init_linear(keys[1], d_model, d_model)
    wv, bv = _init_linear(keys[2], d_model, d_model)
    wo, bo = _init_linear(keys[3], d_model, d_model)
    w1, b1 = _init_linear(keys[4], d_model, h)
    w2, b2 = _init_linear(keys[5], h, h)
    w3, b3 = _init_linear(keys[6], h, d_model)
    ones = lambda n: jnp.ones((n,), jnp.float32)
    zeros = lambda n: jnp.zeros((n,), jnp.float32)
    return dict(
        w_qkv=jnp.concatenate([wq, wk, wv], axis=1).astype(jnp.bfloat16),  # (D, 3D)
        w_o=wo.astype(jnp.bfloat16),
        w1=w1.astype(jnp.bfloat16),
        w2=w2.astype(jnp.bfloat16),
        w3=w3.astype(jnp.bfloat16),
        # rows: bq bk bv bo b3 g_ff b_ff g_enc b_enc
        vecs_d=jnp.stack([bq, bk, bv, bo, b3,
                          ones(d_model), zeros(d_model),
                          ones(d_model), zeros(d_model)], axis=0),
        # rows: b1 g1 be1 b2 g2 be2
        vecs_h=jnp.stack([b1, ones(h), zeros(h), b2, ones(h), zeros(h)], axis=0),
    )


def init_params(key, d_model, n_layers, scale=1):
    layers = [_init_layer(k, d_model, scale) for k in jax.random.split(key, n_layers)]
    return {name: jnp.stack([lp[name] for lp in layers], axis=0) for name in layers[0]}


if __name__ == "__main__":
    B, S, D = 2, 8, 32
    n_heads, n_layers, scale = 4, 2, 1

    root = jax.random.PRNGKey(0)
    kx, kp = jax.random.split(root)
    x = jax.random.normal(kx, (B, S, D), jnp.float32)
    params = init_params(kp, D, n_layers, scale)

    fwd = jax.jit(functools.partial(imp_encoder_forward, num_heads=n_heads))
    out = fwd(x, params)
    jax.block_until_ready(out)
    assert out.shape == (B, S, D)
    assert bool(jnp.all(jnp.isfinite(out)))
    print("KERNEL_OK")
</pallas_src>

<mosaic_0001>
module attributes {stable_mosaic.version = 11 : i64} {
  func.func @imp_encoder_kernel(%arg0: i32, %arg1: i32, %arg2: memref<1x8x32xf32, #tpu.memory_space<vmem>>, %arg3: memref<1x32x96xbf16, #tpu.memory_space<vmem>>, %arg4: memref<1x32x32xbf16, #tpu.memory_space<vmem>>, %arg5: memref<1x32x32xbf16, #tpu.memory_space<vmem>>, %arg6: memref<1x32x32xbf16, #tpu.memory_space<vmem>>, %arg7: memref<1x32x32xbf16, #tpu.memory_space<vmem>>, %arg8: memref<1x9x32xf32, #tpu.memory_space<vmem>>, %arg9: memref<1x6x32xf32, #tpu.memory_space<vmem>>, %arg10: memref<1x8x32xf32, #tpu.memory_space<vmem>>, %arg11: memref<8x32xf32, #tpu.memory_space<vmem>>) attributes {dimension_semantics = [#tpu.dimension_semantics<parallel>, #tpu.dimension_semantics<arbitrary>], iteration_bounds = array<i64: 2, 2>, scalar_prefetch = 0 : i64, scratch_operands = 1 : i64, tpu.core_type = #tpu.core_type<tc>, window_params = [{transform_indices = @transform_0, window_bounds = array<i64: 1, 8, 32>}, {transform_indices = @transform_1, window_bounds = array<i64: 1, 32, 96>}, {transform_indices = @transform_2, window_bounds = array<i64: 1, 32, 32>}, {transform_indices = @transform_3, window_bounds = array<i64: 1, 32, 32>}, {transform_indices = @transform_4, window_bounds = array<i64: 1, 32, 32>}, {transform_indices = @transform_5, window_bounds = array<i64: 1, 32, 32>}, {transform_indices = @transform_6, window_bounds = array<i64: 1, 9, 32>}, {transform_indices = @transform_7, window_bounds = array<i64: 1, 6, 32>}, {transform_indices = @transform_8, window_bounds = array<i64: 1, 8, 32>}]} {
    %c0_i32 = arith.constant 0 : i32
    %0 = arith.cmpi eq, %arg1, %c0_i32 : i32
    %1 = arith.extui %0 : i1 to i32
    %c0_i32_0 = arith.constant 0 : i32
    %2 = arith.cmpi ne, %1, %c0_i32_0 : i32
    scf.if %2 {
      %c0_69 = arith.constant 0 : index
      %c0_70 = arith.constant 0 : index
      %c0_71 = arith.constant 0 : index
      %243 = vector.load %arg2[%c0_69, %c0_70, %c0_71] : memref<1x8x32xf32, #tpu.memory_space<vmem>>, vector<1x8x32xf32>
      %244 = vector.shape_cast %243 : vector<1x8x32xf32> to vector<8x32xf32>
      %c0_72 = arith.constant 0 : index
      %c0_73 = arith.constant 0 : index
      %245 = vector.load %arg11[%c0_72, %c0_73] : memref<8x32xf32, #tpu.memory_space<vmem>>, vector<8x32xf32>
      tpu.vector_store %arg11[%c0_72, %c0_73], %244 {strides = array<i32>} : memref<8x32xf32, #tpu.memory_space<vmem>>, vector<8x32xf32>,
    } else {
    }
    %c0 = arith.constant 0 : index
    %c0_1 = arith.constant 0 : index
    %3 = vector.load %arg11[%c0, %c0_1] : memref<8x32xf32, #tpu.memory_space<vmem>>, vector<8x32xf32>
    %c0_2 = arith.constant 0 : index
    %c0_3 = arith.constant 0 : index
    %c0_4 = arith.constant 0 : index
    %4 = vector.load %arg8[%c0_2, %c0_3, %c0_4] : memref<1x9x32xf32, #tpu.memory_space<vmem>>, vector<1x9x32xf32>
    %5 = vector.shape_cast %4 : vector<1x9x32xf32> to vector<9x32xf32>
    %c0_5 = arith.constant 0 : index
    %c0_6 = arith.constant 0 : index
    %c0_7 = arith.constant 0 : index
    %6 = vector.load %arg9[%c0_5, %c0_6, %c0_7] : memref<1x6x32xf32, #tpu.memory_space<vmem>>, vector<1x6x32xf32>
    %7 = vector.shape_cast %6 : vector<1x6x32xf32> to vector<6x32xf32>
    %8 = arith.truncf %3 : vector<8x32xf32> to vector<8x32xbf16>
    %c0_8 = arith.constant 0 : index
    %c0_9 = arith.constant 0 : index
    %c0_10 = arith.constant 0 : index
    %9 = vector.load %arg3[%c0_8, %c0_9, %c0_10] : memref<1x32x96xbf16, #tpu.memory_space<vmem>>, vector<1x32x96xbf16>
    %10 = vector.shape_cast %9 : vector<1x32x96xbf16> to vector<32x96xbf16>
    %cst = arith.constant dense<0.000000e+00> : vector<8x96xf32>
    %11 = tpu.matmul %8, %10, %cst {dimension_numbers = #tpu.dot_dimension_numbers<[1], [0], [0], [1], [0, 0, 1, 1], [], []>} : vector<8x32xbf16>, vector<32x96xbf16>, vector<8x96xf32> -> vector<8x96xf32>
    %12 = vector.extract_strided_slice %11 {offsets = [0, 0], sizes = [8, 32], strides = [1, 1]} : vector<8x96xf32> to vector<8x32xf32>
    %13 = vector.extract_strided_slice %5 {offsets = [0, 0], sizes = [1, 32], strides = [1, 1]} : vector<9x32xf32> to vector<1x32xf32>
    %14 = vector.broadcast %13 : vector<1x32xf32> to vector<8x32xf32>
    %15 = arith.addf %12, %14 : vector<8x32xf32>
    %cst_11 = arith.constant 0.353553385 : f32
    %16 = vector.broadcast %cst_11 : f32 to vector<8x32xf32>
    %17 = arith.mulf %15, %16 : vector<8x32xf32>
    %18 = vector.shape_cast %17 : vector<8x32xf32> to vector<1x8x32xf32>
    %19 = vector.extract_strided_slice %11 {offsets = [0, 32], sizes = [8, 32], strides = [1, 1]} : vector<8x96xf32> to vector<8x32xf32>
    %20 = vector.extract_strided_slice %5 {offsets = [1, 0], sizes = [1, 32], strides = [1, 1]} : vector<9x32xf32> to vector<1x32xf32>
    %21 = vector.broadcast %20 : vector<1x32xf32> to vector<8x32xf32>
    %22 = arith.addf %19, %21 : vector<8x32xf32>
    %23 = vector.shape_cast %22 : vector<8x32xf32> to vector<1x8x32xf32>
    %24 = vector.extract_strided_slice %11 {offsets = [0, 64], sizes = [8, 32], strides = [1, 1]} : vector<8x96xf32> to vector<8x32xf32>
    %25 = vector.extract_strided_slice %5 {offsets = [2, 0], sizes = [1, 32], strides = [1, 1]} : vector<9x32xf32> to vector<1x32xf32>
    %26 = vector.broadcast %25 : vector<1x32xf32> to vector<8x32xf32>
    %27 = arith.addf %24, %26 : vector<8x32xf32>
    %28 = vector.shape_cast %27 : vector<8x32xf32> to vector<1x8x32xf32>
    %29 = vector.extract_strided_slice %18 {offsets = [0, 0, 0], sizes = [1, 8, 8], strides = [1, 1, 1]} : vector<1x8x32xf32> to vector<1x8x8xf32>
    %30 = arith.truncf %29 : vector<1x8x8xf32> to vector<1x8x8xbf16>
    %31 = vector.extract_strided_slice %23 {offsets = [0, 0, 0], sizes = [1, 8, 8], strides = [1, 1, 1]} : vector<1x8x32xf32> to vector<1x8x8xf32>
    %32 = arith.truncf %31 : vector<1x8x8xf32> to vector<1x8x8xbf16>
    %33 = vector.extract_strided_slice %28 {offsets = [0, 0, 0], sizes = [1, 8, 8], strides = [1, 1, 1]} : vector<1x8x32xf32> to vector<1x8x8xf32>
    %34 = arith.truncf %33 : vector<1x8x8xf32> to vector<1x8x8xbf16>
    "tpu.trace_start"() <{level = 10 : i32, message = "bqd,bkd->bqk"}> : () -> ()
    %cst_12 = arith.constant dense<0.000000e+00> : vector<1x8x8xf32>
    %35 = tpu.matmul %30, %32, %cst_12 {dimension_numbers = #tpu.dot_dimension_numbers<[2], [2], [1], [1], [0, 0, 0, 1, 1, 1], [0], [0]>} : vector<1x8x8xbf16>, vector<1x8x8xbf16>, vector<1x8x8xf32> -> vector<1x8x8xf32>
    "tpu.trace_stop"() : () -> ()
    %cst_13 = arith.constant dense<0xFF800000> : vector<1x8xf32>
    %36 = vector.multi_reduction <maximumf>, %35, %cst_13 [2] : vector<1x8x8xf32> to vector<1x8xf32>
    %37 = vector.shape_cast %36 : vector<1x8xf32> to vector<1x8x1xf32>
    %38 = vector.broadcast %37 : vector<1x8x1xf32> to vector<1x8x8xf32>
    %39 = arith.subf %35, %38 : vector<1x8x8xf32>
    %40 = math.exp %39 : vector<1x8x8xf32>
    %cst_14 = arith.constant dense<0.000000e+00> : vector<1x8xf32>
    %41 = vector.multi_reduction <add>, %40, %cst_14 [2] : vector<1x8x8xf32> to vector<1x8xf32>
    %42 = vector.shape_cast %41 : vector<1x8xf32> to vector<1x8x1xf32>
    %43 = tpu.reciprocal %42 {approx = true} : vector<1x8x1xf32> -> vector<1x8x1xf32>
    %44 = vector.broadcast %43 : vector<1x8x1xf32> to vector<1x8x8xf32>
    %45 = arith.mulf %40, %44 : vector<1x8x8xf32>
    %46 = arith.truncf %45 : vector<1x8x8xf32> to vector<1x8x8xbf16>
    "tpu.trace_start"() <{level = 10 : i32, message = "bqk,bkd->bqd"}> : () -> ()
    %cst_15 = arith.constant dense<0.000000e+00> : vector<1x8x8xf32>
    %47 = tpu.matmul %46, %34, %cst_15 {dimension_numbers = #tpu.dot_dimension_numbers<[2], [1], [1], [2], [0, 0, 0, 1, 1, 2], [0], [0]>} : vector<1x8x8xbf16>, vector<1x8x8xbf16>, vector<1x8x8xf32> -> vector<1x8x8xf32>
    "tpu.trace_stop"() : () -> ()
    %48 = vector.shape_cast %47 : vector<1x8x8xf32> to vector<8x8xf32>
    %49 = vector.extract_strided_slice %18 {offsets = [0, 0, 8], sizes = [1, 8, 8], strides = [1, 1, 1]} : vector<1x8x32xf32> to vector<1x8x8xf32>
    %50 = arith.truncf %49 : vector<1x8x8xf32> to vector<1x8x8xbf16>
    %51 = vector.extract_strided_slice %23 {offsets = [0, 0, 8], sizes = [1, 8, 8], strides = [1, 1, 1]} : vector<1x8x32xf32> to vector<1x8x8xf32>
    %52 = arith.truncf %51 : vector<1x8x8xf32> to vector<1x8x8xbf16>
    %53 = vector.extract_strided_slice %28 {offsets = [0, 0, 8], sizes = [1, 8, 8], strides = [1, 1, 1]} : vector<1x8x32xf32> to vector<1x8x8xf32>
    %54 = arith.truncf %53 : vector<1x8x8xf32> to vector<1x8x8xbf16>
    "tpu.trace_start"() <{level = 10 : i32, message = "bqd,bkd->bqk"}> : () -> ()
    %cst_16 = arith.constant dense<0.000000e+00> : vector<1x8x8xf32>
    %55 = tpu.matmul %50, %52, %cst_16 {dimension_numbers = #tpu.dot_dimension_numbers<[2], [2], [1], [1], [0, 0, 0, 1, 1, 1], [0], [0]>} : vector<1x8x8xbf16>, vector<1x8x8xbf16>, vector<1x8x8xf32> -> vector<1x8x8xf32>
    "tpu.trace_stop"() : () -> ()
    %cst_17 = arith.constant dense<0xFF800000> : vector<1x8xf32>
    %56 = vector.multi_reduction <maximumf>, %55, %cst_17 [2] : vector<1x8x8xf32> to vector<1x8xf32>
    %57 = vector.shape_cast %56 : vector<1x8xf32> to vector<1x8x1xf32>
    %58 = vector.broadcast %57 : vector<1x8x1xf32> to vector<1x8x8xf32>
    %59 = arith.subf %55, %58 : vector<1x8x8xf32>
    %60 = math.exp %59 : vector<1x8x8xf32>
    %cst_18 = arith.constant dense<0.000000e+00> : vector<1x8xf32>
    %61 = vector.multi_reduction <add>, %60, %cst_18 [2] : vector<1x8x8xf32> to vector<1x8xf32>
    %62 = vector.shape_cast %61 : vector<1x8xf32> to vector<1x8x1xf32>
    %63 = tpu.reciprocal %62 {approx = true} : vector<1x8x1xf32> -> vector<1x8x1xf32>
    %64 = vector.broadcast %63 : vector<1x8x1xf32> to vector<1x8x8xf32>
    %65 = arith.mulf %60, %64 : vector<1x8x8xf32>
    %66 = arith.truncf %65 : vector<1x8x8xf32> to vector<1x8x8xbf16>
    "tpu.trace_start"() <{level = 10 : i32, message = "bqk,bkd->bqd"}> : () -> ()
    %cst_19 = arith.constant dense<0.000000e+00> : vector<1x8x8xf32>
    %67 = tpu.matmul %66, %54, %cst_19 {dimension_numbers = #tpu.dot_dimension_numbers<[2], [1], [1], [2], [0, 0, 0, 1, 1, 2], [0], [0]>} : vector<1x8x8xbf16>, vector<1x8x8xbf16>, vector<1x8x8xf32> -> vector<1x8x8xf32>
    "tpu.trace_stop"() : () -> ()
    %68 = vector.shape_cast %67 : vector<1x8x8xf32> to vector<8x8xf32>
    %69 = vector.extract_strided_slice %18 {offsets = [0, 0, 16], sizes = [1, 8, 8], strides = [1, 1, 1]} : vector<1x8x32xf32> to vector<1x8x8xf32>
    %70 = arith.truncf %69 : vector<1x8x8xf32> to vector<1x8x8xbf16>
    %71 = vector.extract_strided_slice %23 {offsets = [0, 0, 16], sizes = [1, 8, 8], strides = [1, 1, 1]} : vector<1x8x32xf32> to vector<1x8x8xf32>
    %72 = arith.truncf %71 : vector<1x8x8xf32> to vector<1x8x8xbf16>
    %73 = vector.extract_strided_slice %28 {offsets = [0, 0, 16], sizes = [1, 8, 8], strides = [1, 1, 1]} : vector<1x8x32xf32> to vector<1x8x8xf32>
    %74 = arith.truncf %73 : vector<1x8x8xf32> to vector<1x8x8xbf16>
    "tpu.trace_start"() <{level = 10 : i32, message = "bqd,bkd->bqk"}> : () -> ()
    %cst_20 = arith.constant dense<0.000000e+00> : vector<1x8x8xf32>
    %75 = tpu.matmul %70, %72, %cst_20 {dimension_numbers = #tpu.dot_dimension_numbers<[2], [2], [1], [1], [0, 0, 0, 1, 1, 1], [0], [0]>} : vector<1x8x8xbf16>, vector<1x8x8xbf16>, vector<1x8x8xf32> -> vector<1x8x8xf32>
    "tpu.trace_stop"() : () -> ()
    %cst_21 = arith.constant dense<0xFF800000> : vector<1x8xf32>
    %76 = vector.multi_reduction <maximumf>, %75, %cst_21 [2] : vector<1x8x8xf32> to vector<1x8xf32>
    %77 = vector.shape_cast %76 : vector<1x8xf32> to vector<1x8x1xf32>
    %78 = vector.broadcast %77 : vector<1x8x1xf32> to vector<1x8x8xf32>
    %79 = arith.subf %75, %78 : vector<1x8x8xf32>
    %80 = math.exp %79 : vector<1x8x8xf32>
    %cst_22 = arith.constant dense<0.000000e+00> : vector<1x8xf32>
    %81 = vector.multi_reduction <add>, %80, %cst_22 [2] : vector<1x8x8xf32> to vector<1x8xf32>
    %82 = vector.shape_cast %81 : vector<1x8xf32> to vector<1x8x1xf32>
    %83 = tpu.reciprocal %82 {approx = true} : vector<1x8x1xf32> -> vector<1x8x1xf32>
    %84 = vector.broadcast %83 : vector<1x8x1xf32> to vector<1x8x8xf32>
    %85 = arith.mulf %80, %84 : vector<1x8x8xf32>
    %86 = arith.truncf %85 : vector<1x8x8xf32> to vector<1x8x8xbf16>
    "tpu.trace_start"() <{level = 10 : i32, message = "bqk,bkd->bqd"}> : () -> ()
    %cst_23 = arith.constant dense<0.000000e+00> : vector<1x8x8xf32>
    %87 = tpu.matmul %86, %74, %cst_23 {dimension_numbers = #tpu.dot_dimension_numbers<[2], [1], [1], [2], [0, 0, 0, 1, 1, 2], [0], [0]>} : vector<1x8x8xbf16>, vector<1x8x8xbf16>, vector<1x8x8xf32> -> vector<1x8x8xf32>
    "tpu.trace_stop"() : () -> ()
    %88 = vector.shape_cast %87 : vector<1x8x8xf32> to vector<8x8xf32>
    %89 = vector.extract_strided_slice %18 {offsets = [0, 0, 24], sizes = [1, 8, 8], strides = [1, 1, 1]} : vector<1x8x32xf32> to vector<1x8x8xf32>
    %90 = arith.truncf %89 : vector<1x8x8xf32> to vector<1x8x8xbf16>
    %91 = vector.extract_strided_slice %23 {offsets = [0, 0, 24], sizes = [1, 8, 8], strides = [1, 1, 1]} : vector<1x8x32xf32> to vector<1x8x8xf32>
    %92 = arith.truncf %91 : vector<1x8x8xf32> to vector<1x8x8xbf16>
    %93 = vector.extract_strided_slice %28 {offsets = [0, 0, 24], sizes = [1, 8, 8], strides = [1, 1, 1]} : vector<1x8x32xf32> to vector<1x8x8xf32>
    %94 = arith.truncf %93 : vector<1x8x8xf32> to vector<1x8x8xbf16>
    "tpu.trace_start"() <{level = 10 : i32, message = "bqd,bkd->bqk"}> : () -> ()
    %cst_24 = arith.constant dense<0.000000e+00> : vector<1x8x8xf32>
    %95 = tpu.matmul %90, %92, %cst_24 {dimension_numbers = #tpu.dot_dimension_numbers<[2], [2], [1], [1], [0, 0, 0, 1, 1, 1], [0], [0]>} : vector<1x8x8xbf16>, vector<1x8x8xbf16>, vector<1x8x8xf32> -> vector<1x8x8xf32>
    "tpu.trace_stop"() : () -> ()
    %cst_25 = arith.constant dense<0xFF800000> : vector<1x8xf32>
    %96 = vector.multi_reduction <maximumf>, %95, %cst_25 [2] : vector<1x8x8xf32> to vector<1x8xf32>
    %97 = vector.shape_cast %96 : vector<1x8xf32> to vector<1x8x1xf32>
    %98 = vector.broadcast %97 : vector<1x8x1xf32> to vector<1x8x8xf32>
    %99 = arith.subf %95, %98 : vector<1x8x8xf32>
    %100 = math.exp %99 : vector<1x8x8xf32>
    %cst_26 = arith.constant dense<0.000000e+00> : vector<1x8xf32>
    %101 = vector.multi_reduction <add>, %100, %cst_26 [2] : vector<1x8x8xf32> to vector<1x8xf32>
    %102 = vector.shape_cast %101 : vector<1x8xf32> to vector<1x8x1xf32>
    %103 = tpu.reciprocal %102 {approx = true} : vector<1x8x1xf32> -> vector<1x8x1xf32>
    %104 = vector.broadcast %103 : vector<1x8x1xf32> to vector<1x8x8xf32>
    %105 = arith.mulf %100, %104 : vector<1x8x8xf32>
    %106 = arith.truncf %105 : vector<1x8x8xf32> to vector<1x8x8xbf16>
    "tpu.trace_start"() <{level = 10 : i32, message = "bqk,bkd->bqd"}> : () -> ()
    %cst_27 = arith.constant dense<0.000000e+00> : vector<1x8x8xf32>
    %107 = tpu.matmul %106, %94, %cst_27 {dimension_numbers = #tpu.dot_dimension_numbers<[2], [1], [1], [2], [0, 0, 0, 1, 1, 2], [0], [0]>} : vector<1x8x8xbf16>, vector<1x8x8xbf16>, vector<1x8x8xf32> -> vector<1x8x8xf32>
    "tpu.trace_stop"() : () -> ()
    %108 = vector.shape_cast %107 : vector<1x8x8xf32> to vector<8x8xf32>
    %109 = tpu.concatenate %48, %68, %88, %108 in 1 : vector<8x8xf32>, vector<8x8xf32>, vector<8x8xf32>, vector<8x8xf32> -> vector<8x32xf32>
    %110 = arith.truncf %109 : vector<8x32xf32> to vector<8x32xbf16>
    %c0_28 = arith.constant 0 : index
    %c0_29 = arith.constant 0 : index
    %c0_30 = arith.constant 0 : index
    %111 = vector.load %arg4[%c0_28, %c0_29, %c0_30] : memref<1x32x32xbf16, #tpu.memory_space<vmem>>, vector<1x32x32xbf16>
    %112 = vector.shape_cast %111 : vector<1x32x32xbf16> to vector<32x32xbf16>
    %cst_31 = arith.constant dense<0.000000e+00> : vector<8x32xf32>
    %113 = tpu.matmul %110, %112, %cst_31 {dimension_numbers = #tpu.dot_dimension_numbers<[1], [0], [0], [1], [0, 0, 1, 1], [], []>} : vector<8x32xbf16>, vector<32x32xbf16>, vector<8x32xf32> -> vector<8x32xf32>
    %114 = vector.extract_strided_slice %5 {offsets = [3, 0], sizes = [1, 32], strides = [1, 1]} : vector<9x32xf32> to vector<1x32xf32>
    %115 = vector.broadcast %114 : vector<1x32xf32> to vector<8x32xf32>
    %116 = arith.addf %113, %115 : vector<8x32xf32>
    %117 = arith.truncf %116 : vector<8x32xf32> to vector<8x32xbf16>
    %c0_32 = arith.constant 0 : index
    %c0_33 = arith.constant 0 : index
    %c0_34 = arith.constant 0 : index
    %118 = vector.load %arg5[%c0_32, %c0_33, %c0_34] : memref<1x32x32xbf16, #tpu.memory_space<vmem>>, vector<1x32x32xbf16>
    %119 = vector.shape_cast %118 : vector<1x32x32xbf16> to vector<32x32xbf16>
    %cst_35 = arith.constant dense<0.000000e+00> : vector<8x32xf32>
    %120 = tpu.matmul %117, %119, %cst_35 {dimension_numbers = #tpu.dot_dimension_numbers<[1], [0], [0], [1], [0, 0, 1, 1], [], []>} : vector<8x32xbf16>, vector<32x32xbf16>, vector<8x32xf32> -> vector<8x32xf32>
    %121 = vector.extract_strided_slice %7 {offsets = [0, 0], sizes = [1, 32], strides = [1, 1]} : vector<6x32xf32> to vector<1x32xf32>
    %122 = vector.broadcast %121 : vector<1x32xf32> to vector<8x32xf32>
    %123 = arith.addf %120, %122 : vector<8x32xf32>
    %124 = vector.extract_strided_slice %7 {offsets = [1, 0], sizes = [1, 32], strides = [1, 1]} : vector<6x32xf32> to vector<1x32xf32>
    %125 = vector.extract_strided_slice %7 {offsets = [2, 0], sizes = [1, 32], strides = [1, 1]} : vector<6x32xf32> to vector<1x32xf32>
    %cst_36 = arith.constant dense<0.000000e+00> : vector<8xf32>
    %126 = vector.multi_reduction <add>, %123, %cst_36 [1] : vector<8x32xf32> to vector<8xf32>
    %127 = vector.shape_cast %126 : vector<8xf32> to vector<8x1xf32>
    %cst_37 = arith.constant 3.200000e+01 : f32
    %128 = vector.broadcast %cst_37 : f32 to vector<8x1xf32>
    %129 = arith.divf %127, %128 : vector<8x1xf32>
    %130 = vector.broadcast %129 : vector<8x1xf32> to vector<8x32xf32>
    %131 = arith.subf %123, %130 : vector<8x32xf32>
    %132 = arith.mulf %131, %131 : vector<8x32xf32>
    %cst_38 = arith.constant dense<0.000000e+00> : vector<8xf32>
    %133 = vector.multi_reduction <add>, %132, %cst_38 [1] : vector<8x32xf32> to vector<8xf32>
    %134 = vector.shape_cast %133 : vector<8xf32> to vector<8x1xf32>
    %cst_39 = arith.constant 3.200000e+01 : f32
    %135 = vector.broadcast %cst_39 : f32 to vector<8x1xf32>
    %136 = arith.divf %134, %135 : vector<8x1xf32>
    %137 = vector.broadcast %129 : vector<8x1xf32> to vector<8x32xf32>
    %138 = arith.subf %123, %137 : vector<8x32xf32>
    %cst_40 = arith.constant 9.99999974E-6 : f32
    %139 = vector.broadcast %cst_40 : f32 to vector<8x1xf32>
    %140 = arith.addf %136, %139 : vector<8x1xf32>
    %141 = math.rsqrt %140 : vector<8x1xf32>
    %142 = vector.broadcast %141 : vector<8x1xf32> to vector<8x32xf32>
    %143 = arith.mulf %138, %142 : vector<8x32xf32>
    %144 = vector.broadcast %124 : vector<1x32xf32> to vector<8x32xf32>
    %145 = arith.mulf %143, %144 : vector<8x32xf32>
    %146 = vector.broadcast %125 : vector<1x32xf32> to vector<8x32xf32>
    %147 = arith.addf %145, %146 : vector<8x32xf32>
    %cst_41 = arith.constant 0.000000e+00 : f32
    %148 = vector.broadcast %cst_41 : f32 to vector<8x32xf32>
    %149 = arith.maximumf %147, %148 : vector<8x32xf32>
    %150 = arith.truncf %149 : vector<8x32xf32> to vector<8x32xbf16>
    %c0_42 = arith.constant 0 : index
    %c0_43 = arith.constant 0 : index
    %c0_44 = arith.constant 0 : index
    %151 = vector.load %arg6[%c0_42, %c0_43, %c0_44] : memref<1x32x32xbf16, #tpu.memory_space<vmem>>, vector<1x32x32xbf16>
    %152 = vector.shape_cast %151 : vector<1x32x32xbf16> to vector<32x32xbf16>
    %cst_45 = arith.constant dense<0.000000e+00> : vector<8x32xf32>
    %153 = tpu.matmul %150, %152, %cst_45 {dimension_numbers = #tpu.dot_dimension_numbers<[1], [0], [0], [1], [0, 0, 1, 1], [], []>} : vector<8x32xbf16>, vector<32x32xbf16>, vector<8x32xf32> -> vector<8x32xf32>
    %154 = vector.extract_strided_slice %7 {offsets = [3, 0], sizes = [1, 32], strides = [1, 1]} : vector<6x32xf32> to vector<1x32xf32>
    %155 = vector.broadcast %154 : vector<1x32xf32> to vector<8x32xf32>
    %156 = arith.addf %153, %155 : vector<8x32xf32>
    %157 = vector.extract_strided_slice %7 {offsets = [4, 0], sizes = [1, 32], strides = [1, 1]} : vector<6x32xf32> to vector<1x32xf32>
    %158 = vector.extract_strided_slice %7 {offsets = [5, 0], sizes = [1, 32], strides = [1, 1]} : vector<6x32xf32> to vector<1x32xf32>
    %cst_46 = arith.constant dense<0.000000e+00> : vector<8xf32>
    %159 = vector.multi_reduction <add>, %156, %cst_46 [1] : vector<8x32xf32> to vector<8xf32>
    %160 = vector.shape_cast %159 : vector<8xf32> to vector<8x1xf32>
    %cst_47 = arith.constant 3.200000e+01 : f32
    %161 = vector.broadcast %cst_47 : f32 to vector<8x1xf32>
    %162 = arith.divf %160, %161 : vector<8x1xf32>
    %163 = vector.broadcast %162 : vector<8x1xf32> to vector<8x32xf32>
    %164 = arith.subf %156, %163 : vector<8x32xf32>
    %165 = arith.mulf %164, %164 : vector<8x32xf32>
    %cst_48 = arith.constant dense<0.000000e+00> : vector<8xf32>
    %166 = vector.multi_reduction <add>, %165, %cst_48 [1] : vector<8x32xf32> to vector<8xf32>
    %167 = vector.shape_cast %166 : vector<8xf32> to vector<8x1xf32>
    %cst_49 = arith.constant 3.200000e+01 : f32
    %168 = vector.broadcast %cst_49 : f32 to vector<8x1xf32>
    %169 = arith.divf %167, %168 : vector<8x1xf32>
    %170 = vector.broadcast %162 : vector<8x1xf32> to vector<8x32xf32>
    %171 = arith.subf %156, %170 : vector<8x32xf32>
    %cst_50 = arith.constant 9.99999974E-6 : f32
    %172 = vector.broadcast %cst_50 : f32 to vector<8x1xf32>
    %173 = arith.addf %169, %172 : vector<8x1xf32>
    %174 = math.rsqrt %173 : vector<8x1xf32>
    %175 = vector.broadcast %174 : vector<8x1xf32> to vector<8x32xf32>
    %176 = arith.mulf %171, %175 : vector<8x32xf32>
    %177 = vector.broadcast %157 : vector<1x32xf32> to vector<8x32xf32>
    %178 = arith.mulf %176, %177 : vector<8x32xf32>
    %179 = vector.broadcast %158 : vector<1x32xf32> to vector<8x32xf32>
    %180 = arith.addf %178, %179 : vector<8x32xf32>
    %cst_51 = arith.constant 0.000000e+00 : f32
    %181 = vector.broadcast %cst_51 : f32 to vector<8x32xf32>
    %182 = arith.maximumf %180, %181 : vector<8x32xf32>
    %183 = arith.truncf %182 : vector<8x32xf32> to vector<8x32xbf16>
    %c0_52 = arith.constant 0 : index
    %c0_53 = arith.constant 0 : index
    %c0_54 = arith.constant 0 : index
    %184 = vector.load %arg7[%c0_52, %c0_53, %c0_54] : memref<1x32x32xbf16, #tpu.memory_space<vmem>>, vector<1x32x32xbf16>
    %185 = vector.shape_cast %184 : vector<1x32x32xbf16> to vector<32x32xbf16>
    %cst_55 = arith.constant dense<0.000000e+00> : vector<8x32xf32>
    %186 = tpu.matmul %183, %185, %cst_55 {dimension_numbers = #tpu.dot_dimension_numbers<[1], [0], [0], [1], [0, 0, 1, 1], [], []>} : vector<8x32xbf16>, vector<32x32xbf16>, vector<8x32xf32> -> vector<8x32xf32>
    %187 = vector.extract_strided_slice %5 {offsets = [4, 0], sizes = [1, 32], strides = [1, 1]} : vector<9x32xf32> to vector<1x32xf32>
    %188 = vector.broadcast %187 : vector<1x32xf32> to vector<8x32xf32>
    %189 = arith.addf %186, %188 : vector<8x32xf32>
    %190 = arith.addf %189, %116 : vector<8x32xf32>
    %191 = vector.extract_strided_slice %5 {offsets = [5, 0], sizes = [1, 32], strides = [1, 1]} : vector<9x32xf32> to vector<1x32xf32>
    %192 = vector.extract_strided_slice %5 {offsets = [6, 0], sizes = [1, 32], strides = [1, 1]} : vector<9x32xf32> to vector<1x32xf32>
    %cst_56 = arith.constant dense<0.000000e+00> : vector<8xf32>
    %193 = vector.multi_reduction <add>, %190, %cst_56 [1] : vector<8x32xf32> to vector<8xf32>
    %194 = vector.shape_cast %193 : vector<8xf32> to vector<8x1xf32>
    %cst_57 = arith.constant 3.200000e+01 : f32
    %195 = vector.broadcast %cst_57 : f32 to vector<8x1xf32>
    %196 = arith.divf %194, %195 : vector<8x1xf32>
    %197 = vector.broadcast %196 : vector<8x1xf32> to vector<8x32xf32>
    %198 = arith.subf %190, %197 : vector<8x32xf32>
    %199 = arith.mulf %198, %198 : vector<8x32xf32>
    %cst_58 = arith.constant dense<0.000000e+00> : vector<8xf32>
    %200 = vector.multi_reduction <add>, %199, %cst_58 [1] : vector<8x32xf32> to vector<8xf32>
    %201 = vector.shape_cast %200 : vector<8xf32> to vector<8x1xf32>
    %cst_59 = arith.constant 3.200000e+01 : f32
    %202 = vector.broadcast %cst_59 : f32 to vector<8x1xf32>
    %203 = arith.divf %201, %202 : vector<8x1xf32>
    %204 = vector.broadcast %196 : vector<8x1xf32> to vector<8x32xf32>
    %205 = arith.subf %190, %204 : vector<8x32xf32>
    %cst_60 = arith.constant 9.99999974E-6 : f32
    %206 = vector.broadcast %cst_60 : f32 to vector<8x1xf32>
    %207 = arith.addf %203, %206 : vector<8x1xf32>
    %208 = math.rsqrt %207 : vector<8x1xf32>
    %209 = vector.broadcast %208 : vector<8x1xf32> to vector<8x32xf32>
    %210 = arith.mulf %205, %209 : vector<8x32xf32>
    %211 = vector.broadcast %191 : vector<1x32xf32> to vector<8x32xf32>
    %212 = arith.mulf %210, %211 : vector<8x32xf32>
    %213 = vector.broadcast %192 : vector<1x32xf32> to vector<8x32xf32>
    %214 = arith.addf %212, %213 : vector<8x32xf32>
    %215 = vector.extract_strided_slice %5 {offsets = [7, 0], sizes = [1, 32], strides = [1, 1]} : vector<9x32xf32> to vector<1x32xf32>
    %216 = vector.extract_strided_slice %5 {offsets = [8, 0], sizes = [1, 32], strides = [1, 1]} : vector<9x32xf32> to vector<1x32xf32>
    %cst_61 = arith.constant dense<0.000000e+00> : vector<8xf32>
    %217 = vector.multi_reduction <add>, %214, %cst_61 [1] : vector<8x32xf32> to vector<8xf32>
    %218 = vector.shape_cast %217 : vector<8xf32> to vector<8x1xf32>
    %cst_62 = arith.constant 3.200000e+01 : f32
    %219 = vector.broadcast %cst_62 : f32 to vector<8x1xf32>
    %220 = arith.divf %218, %219 : vector<8x1xf32>
    %221 = vector.broadcast %220 : vector<8x1xf32> to vector<8x32xf32>
    %222 = arith.subf %214, %221 : vector<8x32xf32>
    %223 = arith.mulf %222, %222 : vector<8x32xf32>
    %cst_63 = arith.constant dense<0.000000e+00> : vector<8xf32>
    %224 = vector.multi_reduction <add>, %223, %cst_63 [1] : vector<8x32xf32> to vector<8xf32>
    %225 = vector.shape_cast %224 : vector<8xf32> to vector<8x1xf32>
    %cst_64 = arith.constant 3.200000e+01 : f32
    %226 = vector.broadcast %cst_64 : f32 to vector<8x1xf32>
    %227 = arith.divf %225, %226 : vector<8x1xf32>
    %228 = vector.broadcast %220 : vector<8x1xf32> to vector<8x32xf32>
    %229 = arith.subf %214, %228 : vector<8x32xf32>
    %cst_65 = arith.constant 9.99999974E-6 : f32
    %230 = vector.broadcast %cst_65 : f32 to vector<8x1xf32>
    %231 = arith.addf %227, %230 : vector<8x1xf32>
    %232 = math.rsqrt %231 : vector<8x1xf32>
    %233 = vector.broadcast %232 : vector<8x1xf32> to vector<8x32xf32>
    %234 = arith.mulf %229, %233 : vector<8x32xf32>
    %235 = vector.broadcast %215 : vector<1x32xf32> to vector<8x32xf32>
    %236 = arith.mulf %234, %235 : vector<8x32xf32>
    %237 = vector.broadcast %216 : vector<1x32xf32> to vector<8x32xf32>
    %238 = arith.addf %236, %237 : vector<8x32xf32>
    %c0_66 = arith.constant 0 : index
    %c0_67 = arith.constant 0 : index
    %239 = vector.load %arg11[%c0_66, %c0_67] : memref<8x32xf32, #tpu.memory_space<vmem>>, vector<8x32xf32>
    tpu.vector_store %arg11[%c0_66, %c0_67], %238 {strides = array<i32>} : memref<8x32xf32, #tpu.memory_space<vmem>>, vector<8x32xf32>,
    %c1_i32 = arith.constant 1 : i32
    %240 = arith.cmpi eq, %arg1, %c1_i32 : i32
    %241 = arith.extui %240 : i1 to i32
    %c0_i32_68 = arith.constant 0 : i32
    %242 = arith.cmpi ne, %241, %c0_i32_68 : i32
    scf.if %242 {
      %243 = vector.shape_cast %238 : vector<8x32xf32> to vector<1x8x32xf32>
      %c0_69 = arith.constant 0 : index
      %c0_70 = arith.constant 0 : index
      %c0_71 = arith.constant 0 : index
      %244 = vector.load %arg10[%c0_69, %c0_70, %c0_71] : memref<1x8x32xf32, #tpu.memory_space<vmem>>, vector<1x8x32xf32>
      tpu.vector_store %arg10[%c0_69, %c0_70, %c0_71], %243 {strides = array<i32>} : memref<1x8x32xf32, #tpu.memory_space<vmem>>, vector<1x8x32xf32>,
    } else {
    }
    return
  }
  func.func @transform_0(%arg0: i32, %arg1: i32) -> (i32, i32, i32) {
    %c0_i32 = arith.constant 0 : i32
    %c0_i32_0 = arith.constant 0 : i32
    %c0_i32_1 = arith.constant 0 : i32
    return %arg0, %c0_i32, %c0_i32_0 : i32, i32, i32
  }
  func.func @transform_1(%arg0: i32, %arg1: i32) -> (i32, i32, i32) {
    %c0_i32 = arith.constant 0 : i32
    %c0_i32_0 = arith.constant 0 : i32
    %c0_i32_1 = arith.constant 0 : i32
    return %arg1, %c0_i32, %c0_i32_0 : i32, i32, i32
  }
  func.func @transform_2(%arg0: i32, %arg1: i32) -> (i32, i32, i32) {
    %c0_i32 = arith.constant 0 : i32
    %c0_i32_0 = arith.constant 0 : i32
    %c0_i32_1 = arith.constant 0 : i32
    return %arg1, %c0_i32, %c0_i32_0 : i32, i32, i32
  }
  func.func @transform_3(%arg0: i32, %arg1: i32) -> (i32, i32, i32) {
    %c0_i32 = arith.constant 0 : i32
    %c0_i32_0 = arith.constant 0 : i32
    %c0_i32_1 = arith.constant 0 : i32
    return %arg1, %c0_i32, %c0_i32_0 : i32, i32, i32
  }
  func.func @transform_4(%arg0: i32, %arg1: i32) -> (i32, i32, i32) {
    %c0_i32 = arith.constant 0 : i32
    %c0_i32_0 = arith.constant 0 : i32
    %c0_i32_1 = arith.constant 0 : i32
    return %arg1, %c0_i32, %c0_i32_0 : i32, i32, i32
  }
  func.func @transform_5(%arg0: i32, %arg1: i32) -> (i32, i32, i32) {
    %c0_i32 = arith.constant 0 : i32
    %c0_i32_0 = arith.constant 0 : i32
    %c0_i32_1 = arith.constant 0 : i32
    return %arg1, %c0_i32, %c0_i32_0 : i32, i32, i32
  }
  func.func @transform_6(%arg0: i32, %arg1: i32) -> (i32, i32, i32) {
    %c0_i32 = arith.constant 0 : i32
    %c0_i32_0 = arith.constant 0 : i32
    %c0_i32_1 = arith.constant 0 : i32
    return %arg1, %c0_i32, %c0_i32_0 : i32, i32, i32
  }
  func.func @transform_7(%arg0: i32, %arg1: i32) -> (i32, i32, i32) {
    %c0_i32 = arith.constant 0 : i32
    %c0_i32_0 = arith.constant 0 : i32
    %c0_i32_1 = arith.constant 0 : i32
    return %arg1, %c0_i32, %c0_i32_0 : i32, i32, i32
  }
  func.func @transform_8(%arg0: i32, %arg1: i32) -> (i32, i32, i32) {
    %c0_i32 = arith.constant 0 : i32
    %c0_i32_0 = arith.constant 0 : i32
    %c0_i32_1 = arith.constant 0 : i32
    return %arg0, %c0_i32, %c0_i32_0 : i32, i32, i32
  }
}

</mosaic_0001>

<llo_original>
// kernel: imp_encoder_forward.1
$region0: #{imp_encoder_forward.1}
  #allocation0 [shape = 'u32[]', space=smem, size = 0x4, offset = 0x4, fixed_abs, tag = 'smem constant byte address 0x4 - core index']
  #allocation1 [shape = 'u32[144,128]{1,0:T(1,128)}', space=vmem, size = 0x12000, scoped, tag = 'internal scratch']
  #allocation2 [shape = 'f32[8,32]{1,0:T(8,128)}', space=vmem, size = 0x1000, scoped, tag = 'scratch operand']
  %s0 = inlined_call_operand.hbm [shape: f32[2,8,32], index: 0, kind: input, shape index: {}]
  %s1 = inlined_call_operand.vmem [shape: bf16[2,32,96], index: 1, kind: input, shape index: {}]
  %s2 = inlined_call_operand.vmem [shape: bf16[2,32,32], index: 2, kind: input, shape index: {}]
  %s3 = inlined_call_operand.hbm [shape: bf16[2,32,32], index: 3, kind: input, shape index: {}]
  %s4 = inlined_call_operand.hbm [shape: bf16[2,32,32], index: 4, kind: input, shape index: {}]
  %s5 = inlined_call_operand.vmem [shape: bf16[2,32,32], index: 5, kind: input, shape index: {}]
  %s6 = inlined_call_operand.vmem [shape: f32[2,9,32], index: 6, kind: input, shape index: {}]
  %s7 = inlined_call_operand.vmem [shape: f32[2,6,32], index: 7, kind: input, shape index: {}]
  %s8 = inlined_call_operand.hbm [shape: f32[2,8,32], index: 8, kind: output, shape index: {}]
  %s9 = sld [smem:[#allocation0]]
  $region85: #{imp_encoder_forward.1} parent=0
    _
  %s11 = ssub.s32 1, %s9
  %s12 = scalar_select 0, %s11, %s9
  $region1: #{imp_encoder_forward.1} parent=0
    #allocation3 [shape = 'u8[8192]{0}', space=vmem, size = 0x2000, scoped, tag = 'input window, operand 0']
    #allocation4 [shape = 's32[2]{0}', space=sflag, size = 0x8, scoped, tag = 'scoped memory for imp_encoder_forward.1']
    #allocation5 [shape = 's32[2]{0}', space=sflag, size = 0x8, scoped, tag = 'scoped memory for imp_encoder_forward.1']
    #allocation6 [shape = 'u8[16384]{0}', space=vmem, size = 0x4000, scoped, tag = 'input window, operand 3']
    #allocation7 [shape = 's32[2]{0}', space=sflag, size = 0x8, scoped, tag = 'scoped memory for imp_encoder_forward.1']
    #allocation8 [shape = 'u8[16384]{0}', space=vmem, size = 0x4000, scoped, tag = 'input window, operand 4']
    #allocation9 [shape = 'u8[8192]{0}', space=vmem, size = 0x2000, scoped, tag = 'output window, operand 0']
    %13 = vsyncpa [#allocation4], 0
    %s14 = scalar_lea.sflag [#allocation4], 1
    %15 = vsyncpa %s14, 0
    %16 = vsyncpa [#allocation7], 0
    %s17 = scalar_lea.sflag [#allocation7], 1
    %18 = vsyncpa %s17, 0
    %19 = vsyncpa [#allocation5], 0
    %s20 = scalar_lea.sflag [#allocation5], 1
    %21 = vsyncpa %s20, 0
    loop: start=0, step=1, limit=6
    $region2: #{imp_encoder_forward.1} parent=1 // loop_pre_header
      _
    $region3: #{imp_encoder_forward.1} parent=1 // loop_header
      %s23 = sphi 0, %s27
      %p24 = scmp.ge.s32.totalorder %s23, 6
      %s30 = sphi 0, %s42
      %s31 = sphi 0, %s38
      %s32 = sphi 0, %s30
      %s33 = sphi 0, %s31
      %s34 = sphi 0, %s32
      %s35 = sphi 0, %s33
      %s45 = sphi 0, %s47
      %s48 = sphi 0, %s45
      %s49 = sphi 0, %s48
      %s65 = sphi 0, %s49
      %s71 = sphi 0, %s73
      %s74 = sphi 0, %s71
      %s75 = sphi 0, %s74
      %s91 = sphi 0, %s75
      %s97 = sphi 0, %s99
      %s100 = sphi 0, %s97
      %s101 = sphi 0, %s100
      %s117 = sphi 0, %s101
      %s123 = sphi 0, %s125
      %s126 = sphi 0, %s123
      %s127 = sphi 0, %s126
      %s143 = sphi 0, %s127
      %s149 = sphi 0, %s151
      %s152 = sphi 0, %s149
      %s153 = sphi 0, %s152
      %s169 = sphi 0, %s153
      %s175 = sphi 0, %s177
      %s178 = sphi 0, %s175
      %s179 = sphi 0, %s178
      %s195 = sphi 0, %s179
      %s201 = sphi 0, %s203
      %s204 = sphi 0, %s201
      %s205 = sphi 0, %s204
      %s221 = sphi 0, %s205
      %s227 = sphi 0, %s229
      %s230 = sphi 0, %s227
      %s231 = sphi 0, %s230
      %s247 = sphi 0, %s231
      %s253 = sphi 0, %s255
      %s256 = sphi 0, %s253
      %s257 = sphi 0, %s256
      %s273 = sphi 0, %s257
    $region4: #{imp_encoder_forward.1} parent=1 // loop_header_branch
      %26 = sbr.rel (%p24) target = $region8
    $region5: #{imp_encoder_forward.1} parent=1 // loop_body
      %s28 = ssub.s32 %s23, 1
      %s29 = ssub.s32 %s23, 2
      %s36 = sadd.s32 1, %s31
      %p37 = scmp.ge.s32.totalorder %s36, 2
      %s38 = scalar_select %p37, 0, %s36
      %s39 = sadd.s32 1, %s30
      %s40 = scalar_select %p37, %s39, %s30
      %p41 = scmp.ge.s32.totalorder %s40, 2
      %s42 = scalar_select %p41, 0, %s40
      %s43 = ssub.s32 %s30, %s42
      %p44 = scmp.eq.s32.totalorder %s43, 0
      %s46 = sadd.s32 %s45, 1
      %s47 = scalar_select %p44, %s45, %s46
      %p50 = pneg %p44
      %p51 = scmp.eq.s32.totalorder %s23, 3
      %p52 = por %p50, %p51
      %p53 = scmp.ne.s32.totalorder %s45, %s48
      %p54 = scmp.eq.s32.totalorder %s23, 0
      %p55 = por %p53, %p54
      %p56 = scmp.ne.s32.totalorder %s45, %s48
      %p57 = scmp.eq.s32.totalorder %s28, 3
      %p58 = por %p56, %p57
      %p59 = scmp.ne.s32.totalorder %s48, %s49
      %p60 = scmp.eq.s32.totalorder %s28, 0
      %p61 = por %p59, %p60
      %p62 = scmp.ne.s32.totalorder %s48, %s49
      %p63 = scmp.eq.s32.totalorder %s29, 3
      %p64 = por %p62, %p63
      %p66 = scmp.ne.s32.totalorder %s49, %s65
      %p67 = scmp.eq.s32.totalorder %s29, 0
      %p68 = por %p66, %p67
      %s69 = ssub.s32 %s31, %s38
      %p70 = scmp.eq.s32.totalorder %s69, 0
      %s72 = sadd.s32 %s71, 1
      %s73 = scalar_select %p70, %s71, %s72
      %p76 = pneg %p70
      %p77 = scmp.eq.s32.totalorder %s23, 3
      %p78 = por %p76, %p77
      %p79 = scmp.ne.s32.totalorder %s71, %s74
      %p80 = scmp.eq.s32.totalorder %s23, 0
      %p81 = por %p79, %p80
      %p82 = scmp.ne.s32.totalorder %s71, %s74
      %p83 = scmp.eq.s32.totalorder %s28, 3
      %p84 = por %p82, %p83
      %p85 = scmp.ne.s32.totalorder %s74, %s75
      %p86 = scmp.eq.s32.totalorder %s28, 0
      %p87 = por %p85, %p86
      %p88 = scmp.ne.s32.totalorder %s74, %s75
      %p89 = scmp.eq.s32.totalorder %s29, 3
      %p90 = por %p88, %p89
      %p92 = scmp.ne.s32.totalorder %s75, %s91
      %p93 = scmp.eq.s32.totalorder %s29, 0
      %p94 = por %p92, %p93
      %s95 = ssub.s32 %s31, %s38
      %p96 = scmp.eq.s32.totalorder %s95, 0
      %s98 = sadd.s32 %s97, 1
      %s99 = scalar_select %p96, %s97, %s98
      %p102 = pneg %p96
      %p103 = scmp.eq.s32.totalorder %s23, 3
      %p104 = por %p102, %p103
      %p105 = scmp.ne.s32.totalorder %s97, %s100
      %p106 = scmp.eq.s32.totalorder %s23, 0
      %p107 = por %p105, %p106
      %p108 = scmp.ne.s32.totalorder %s97, %s100
      %p109 = scmp.eq.s32.totalorder %s28, 3
      %p110 = por %p108, %p109
      %p111 = scmp.ne.s32.totalorder %s100, %s101
      %p112 = scmp.eq.s32.totalorder %s28, 0
      %p113 = por %p111, %p112
      %p114 = scmp.ne.s32.totalorder %s100, %s101
      %p115 = scmp.eq.s32.totalorder %s29, 3
      %p116 = por %p114, %p115
      %p118 = scmp.ne.s32.totalorder %s101, %s117
      %p119 = scmp.eq.s32.totalorder %s29, 0
      %p120 = por %p118, %p119
      %s121 = ssub.s32 %s31, %s38
      %p122 = scmp.eq.s32.totalorder %s121, 0
      %s124 = sadd.s32 %s123, 1
      %s125 = scalar_select %p122, %s123, %s124
      %p128 = pneg %p122
      %p129 = scmp.eq.s32.totalorder %s23, 3
      %p130 = por %p128, %p129
      %p131 = scmp.ne.s32.totalorder %s123, %s126
      %p132 = scmp.eq.s32.totalorder %s23, 0
      %p133 = por %p131, %p132
      %p134 = scmp.ne.s32.totalorder %s123, %s126
      %p135 = scmp.eq.s32.totalorder %s28, 3
      %p136 = por %p134, %p135
      %p137 = scmp.ne.s32.totalorder %s126, %s127
      %p138 = scmp.eq.s32.totalorder %s28, 0
      %p139 = por %p137, %p138
      %p140 = scmp.ne.s32.totalorder %s126, %s127
      %p141 = scmp.eq.s32.totalorder %s29, 3
      %p142 = por %p140, %p141
      %p144 = scmp.ne.s32.totalorder %s127, %s143
      %p145 = scmp.eq.s32.totalorder %s29, 0
      %p146 = por %p144, %p145
      %s147 = ssub.s32 %s31, %s38
      %p148 = scmp.eq.s32.totalorder %s147, 0
      %s150 = sadd.s32 %s149, 1
      %s151 = scalar_select %p148, %s149, %s150
      %p154 = pneg %p148
      %p155 = scmp.eq.s32.totalorder %s23, 3
      %p156 = por %p154, %p155
      %p157 = scmp.ne.s32.totalorder %s149, %s152
      %p158 = scmp.eq.s32.totalorder %s23, 0
      %p159 = por %p157, %p158
      %p160 = scmp.ne.s32.totalorder %s149, %s152
      %p161 = scmp.eq.s32.totalorder %s28, 3
      %p162 = por %p160, %p161
      %p163 = scmp.ne.s32.totalorder %s152, %s153
      %p164 = scmp.eq.s32.totalorder %s28, 0
      %p165 = por %p163, %p164
      %p166 = scmp.ne.s32.totalorder %s152, %s153
      %p167 = scmp.eq.s32.totalorder %s29, 3
      %p168 = por %p166, %p167
      %p170 = scmp.ne.s32.totalorder %s153, %s169
      %p171 = scmp.eq.s32.totalorder %s29, 0
      %p172 = por %p170, %p171
      %s173 = ssub.s32 %s31, %s38
      %p174 = scmp.eq.s32.totalorder %s173, 0
      %s176 = sadd.s32 %s175, 1
      %s177 = scalar_select %p174, %s175, %s176
      %p180 = pneg %p174
      %p181 = scmp.eq.s32.totalorder %s23, 3
      %p182 = por %p180, %p181
      %p183 = scmp.ne.s32.totalorder %s175, %s178
      %p184 = scmp.eq.s32.totalorder %s23, 0
      %p185 = por %p183, %p184
      %p186 = scmp.ne.s32.totalorder %s175, %s178
      %p187 = scmp.eq.s32.totalorder %s28, 3
      %p188 = por %p186, %p187
      %p189 = scmp.ne.s32.totalorder %s178, %s179
      %p190 = scmp.eq.s32.totalorder %s28, 0
      %p191 = por %p189, %p190
      %p192 = scmp.ne.s32.totalorder %s178, %s179
      %p193 = scmp.eq.s32.totalorder %s29, 3
      %p194 = por %p192, %p193
      %p196 = scmp.ne.s32.totalorder %s179, %s195
      %p197 = scmp.eq.s32.totalorder %s29, 0
      %p198 = por %p196, %p197
      %s199 = ssub.s32 %s31, %s38
      %p200 = scmp.eq.s32.totalorder %s199, 0
      %s202 = sadd.s32 %s201, 1
      %s203 = scalar_select %p200, %s201, %s202
      %p206 = pneg %p200
      %p207 = scmp.eq.s32.totalorder %s23, 3
      %p208 = por %p206, %p207
      %p209 = scmp.ne.s32.totalorder %s201, %s204
      %p210 = scmp.eq.s32.totalorder %s23, 0
      %p211 = por %p209, %p210
      %p212 = scmp.ne.s32.totalorder %s201, %s204
      %p213 = scmp.eq.s32.totalorder %s28, 3
      %p214 = por %p212, %p213
      %p215 = scmp.ne.s32.totalorder %s204, %s205
      %p216 = scmp.eq.s32.totalorder %s28, 0
      %p217 = por %p215, %p216
      %p218 = scmp.ne.s32.totalorder %s204, %s205
      %p219 = scmp.eq.s32.totalorder %s29, 3
      %p220 = por %p218, %p219
      %p222 = scmp.ne.s32.totalorder %s205, %s221
      %p223 = scmp.eq.s32.totalorder %s29, 0
      %p224 = por %p222, %p223
      %s225 = ssub.s32 %s31, %s38
      %p226 = scmp.eq.s32.totalorder %s225, 0
      %s228 = sadd.s32 %s227, 1
      %s229 = scalar_select %p226, %s227, %s228
      %p232 = pneg %p226
      %p233 = scmp.eq.s32.totalorder %s23, 3
      %p234 = por %p232, %p233
      %p235 = scmp.ne.s32.totalorder %s227, %s230
      %p236 = scmp.eq.s32.totalorder %s23, 0
      %p237 = por %p235, %p236
      %p238 = scmp.ne.s32.totalorder %s227, %s230
      %p239 = scmp.eq.s32.totalorder %s28, 3
      %p240 = por %p238, %p239
      %p241 = scmp.ne.s32.totalorder %s230, %s231
      %p242 = scmp.eq.s32.totalorder %s28, 0
      %p243 = por %p241, %p242
      %p244 = scmp.ne.s32.totalorder %s230, %s231
      %p245 = scmp.eq.s32.totalorder %s29, 3
      %p246 = por %p244, %p245
      %p248 = scmp.ne.s32.totalorder %s231, %s247
      %p249 = scmp.eq.s32.totalorder %s29, 0
      %p250 = por %p248, %p249
      %s251 = ssub.s32 %s30, %s42
      %p252 = scmp.eq.s32.totalorder %s251, 0
      %s254 = sadd.s32 %s253, 1
      %s255 = scalar_select %p252, %s253, %s254
      %p258 = pneg %p252
      %p259 = scmp.eq.s32.totalorder %s23, 3
      %p260 = por %p258, %p259
      %p261 = scmp.ne.s32.totalorder %s253, %s256
      %p262 = scmp.eq.s32.totalorder %s23, 0
      %p263 = por %p261, %p262
      %p264 = scmp.ne.s32.totalorder %s253, %s256
      %p265 = scmp.eq.s32.totalorder %s28, 3
      %p266 = por %p264, %p265
      %p267 = scmp.ne.s32.totalorder %s256, %s257
      %p268 = scmp.eq.s32.totalorder %s28, 0
      %p269 = por %p267, %p268
      %p270 = scmp.ne.s32.totalorder %s256, %s257
      %p271 = scmp.eq.s32.totalorder %s29, 3
      %p272 = por %p270, %p271
      %p274 = scmp.ne.s32.totalorder %s257, %s273
      %p275 = scmp.eq.s32.totalorder %s29, 0
      %p276 = por %p274, %p275
      %p277 = scmp.le.s32.totalorder 1, %s23
      %p278 = scmp.lt.s32.totalorder %s23, 5
      %p279 = pnand %p277, %p278
      %p280 = pneg %p279
      // Predicated region
      $region9: #{imp_encoder_forward.1} parent=5 // pred_check
        _
      $region10: #{imp_encoder_forward.1} parent=5 // pred_check_branch
        %282 = sbr.rel (%p279) target = $region12
      $region11: #{imp_encoder_forward.1} parent=5 // pred_region
        %s283 = ssub.s32 %s23, 1
      $region12: #{imp_encoder_forward.1} parent=5 // pred_fallthru
        _
      %p284 = scmp.lt.s32.totalorder %s23, 4
      // Predicated region
      $region13: #{imp_encoder_forward.1} parent=5 // pred_check
        %p285 = pneg %p284
      $region14: #{imp_encoder_forward.1} parent=5 // pred_check_branch
        %287 = sbr.rel (%p285) target = $region16
      $region15: #{imp_encoder_forward.1} parent=5 // pred_region
        // Predicated region
        $region17: #{imp_encoder_forward.1} parent=15 // pred_check
          %p288 = pneg %p55
        $region18: #{imp_encoder_forward.1} parent=15 // pred_check_branch
          %290 = sbr.rel (%p288) target = $region20
        $region19: #{imp_encoder_forward.1} parent=15 // pred_region
          %s291 = sand.u32 %s45, 1
          %s292 = scalar_lea.sflag [#allocation4], %s291
          %s293 = sand.u32 %s45, 1
          %s294 = smul.addr %s293, 8
          %s295 = scalar_lea.vmem [#allocation3], %s294
          %s297 = ssub.s32 128, 128
          %298 = vsyncadd %s292, %s297
          %s299 = smul.addr %s30, 128
          %s300 = scalar_lea.hbm %s0, %s299
          %s302 = sshll.u32 %s295, 4
          %s303 = int_to_ptr.vmem [resolvable:$true] %s302
          %305 = dma.hbm_to_vmem [thread:$0]  %s300, 128, %s303, %s292
        $region20: #{imp_encoder_forward.1} parent=15 // pred_fallthru
          _
        // Predicated region
        $region21: #{imp_encoder_forward.1} parent=15 // pred_check
          %p306 = pneg %p81
        $region22: #{imp_encoder_forward.1} parent=15 // pred_check_branch
          %308 = sbr.rel (%p306) target = $region24
        $region23: #{imp_encoder_forward.1} parent=15 // pred_region
          %p309 = scmp.lt.s32.totalorder %s31, 1
          %s310 = scalar_select %p309, %s31, 1
          %s311 = smul.addr %s310, 4
          %s312 = smul.addr %s311, 4
          %s313 = scalar_lea.vmem %s1, %s312
        $region24: #{imp_encoder_forward.1} parent=15 // pred_fallthru
          _
        // Predicated region
        $region25: #{imp_encoder_forward.1} parent=15 // pred_check
          %p314 = pneg %p107
        $region26: #{imp_encoder_forward.1} parent=15 // pred_check_branch
          %316 = sbr.rel (%p314) target = $region28
        $region27: #{imp_encoder_forward.1} parent=15 // pred_region
          %p317 = scmp.lt.s32.totalorder %s31, 1
          %s318 = scalar_select %p317, %s31, 1
          %s319 = smul.addr %s318, 4
          %s320 = smul.addr %s319, 4
          %s321 = scalar_lea.vmem %s2, %s320
        $region28: #{imp_encoder_forward.1} parent=15 // pred_fallthru
          _
        // Predicated region
        $region29: #{imp_encoder_forward.1} parent=15 // pred_check
          %p322 = pneg %p133
        $region30: #{imp_encoder_forward.1} parent=15 // pred_check_branch
          %324 = sbr.rel (%p322) target = $region32
        $region31: #{imp_encoder_forward.1} parent=15 // pred_region
          %s325 = sand.u32 %s23, 1
          %s326 = scalar_lea.sflag [#allocation7], %s325
          %s327 = sand.u32 %s123, 1
          %s328 = smul.addr %s327, 16
          %s329 = scalar_lea.vmem [#allocation6], %s328
          %s331 = ssub.s32 256, 256
          %332 = vsyncadd %s326, %s331
          %s333 = smul.addr %s31, 4
          %s334 = smul.addr %s333, 64
          %s335 = scalar_lea.hbm %s3, %s334
          %s336 = sshll.u32 %s329, 4
          %s337 = int_to_ptr.vmem [resolvable:$true] %s336
          %342 = dma.hbm_to_vmem [thread:$0]  %s335, 256, %s337, %s326, 64, 64, 4
        $region32: #{imp_encoder_forward.1} parent=15 // pred_fallthru
          _
        // Predicated region
        $region33: #{imp_encoder_forward.1} parent=15 // pred_check
          %p343 = pneg %p159
        $region34: #{imp_encoder_forward.1} parent=15 // pred_check_branch
          %345 = sbr.rel (%p343) target = $region36
        $region35: #{imp_encoder_forward.1} parent=15 // pred_region
          %s346 = sand.u32 %s23, 1
          %s347 = scalar_lea.sflag [#allocation7], %s346
          %s348 = sand.u32 %s149, 1
          %s349 = smul.addr %s348, 16
          %s350 = scalar_lea.vmem [#allocation8], %s349
          %s352 = ssub.s32 256, 256
          %353 = vsyncadd %s347, %s352
          %s354 = smul.addr %s31, 4
          %s355 = smul.addr %s354, 64
          %s356 = scalar_lea.hbm %s4, %s355
          %s357 = sshll.u32 %s350, 4
          %s358 = int_to_ptr.vmem [resolvable:$true] %s357
          %363 = dma.hbm_to_vmem [thread:$0]  %s356, 256, %s358, %s347, 64, 64, 4
        $region36: #{imp_encoder_forward.1} parent=15 // pred_fallthru
          _
        // Predicated region
        $region37: #{imp_encoder_forward.1} parent=15 // pred_check
          %p364 = pneg %p185
        $region38: #{imp_encoder_forward.1} parent=15 // pred_check_branch
          %366 = sbr.rel (%p364) target = $region40
        $region39: #{imp_encoder_forward.1} parent=15 // pred_region
          %p367 = scmp.lt.s32.totalorder %s31, 1
          %s368 = scalar_select %p367, %s31, 1
          %s369 = smul.addr %s368, 4
          %s370 = smul.addr %s369, 4
          %s371 = scalar_lea.vmem %s5, %s370
        $region40: #{imp_encoder_forward.1} parent=15 // pred_fallthru
          _
        // Predicated region
        $region41: #{imp_encoder_forward.1} parent=15 // pred_check
          %p372 = pneg %p211
        $region42: #{imp_encoder_forward.1} parent=15 // pred_check_branch
          %374 = sbr.rel (%p372) target = $region44
        $region43: #{imp_encoder_forward.1} parent=15 // pred_region
          %p375 = scmp.lt.s32.totalorder %s31, 1
          %s376 = scalar_select %p375, %s31, 1
          %s377 = smul.addr %s376, 2
          %s378 = smul.addr %s377, 8
          %s379 = scalar_lea.vmem %s6, %s378
        $region44: #{imp_encoder_forward.1} parent=15 // pred_fallthru
          _
        // Predicated region
        $region45: #{imp_encoder_forward.1} parent=15 // pred_check
          %p380 = pneg %p237
        $region46: #{imp_encoder_forward.1} parent=15 // pred_check_branch
          %382 = sbr.rel (%p380) target = $region48
        $region47: #{imp_encoder_forward.1} parent=15 // pred_region
          %p383 = scmp.lt.s32.totalorder %s31, 1
          %s384 = scalar_select %p383, %s31, 1
          %s385 = smul.addr %s384, 8
          %s386 = scalar_lea.vmem %s7, %s385
        $region48: #{imp_encoder_forward.1} parent=15 // pred_fallthru
          _
      $region16: #{imp_encoder_forward.1} parent=5 // pred_fallthru
        _
      %p387 = scmp.le.s32.totalorder 1, %s23
      %p388 = scmp.lt.s32.totalorder %s23, 5
      %p389 = pnand %p387, %p388
      %p390 = pneg %p389
      // Predicated region
      $region49: #{imp_encoder_forward.1} parent=5 // pred_check
        _
      $region50: #{imp_encoder_forward.1} parent=5 // pred_check_branch
        %392 = sbr.rel (%p389) target = $region52
      $region51: #{imp_encoder_forward.1} parent=5 // pred_region
        %s393 = ssub.s32 %s23, 1
        %s394 = sand.u32 %s48, 1
        %s395 = scalar_lea.sflag [#allocation4], %s394
        %s396 = sand.u32 %s48, 1
        %s397 = smul.addr %s396, 8
        %s398 = scalar_lea.vmem [#allocation3], %s397
        // Predicated region
        $region53: #{imp_encoder_forward.1} parent=51 // pred_check
          %p399 = pneg %p61
        $region54: #{imp_encoder_forward.1} parent=51 // pred_check_branch
          %401 = sbr.rel (%p399) target = $region56
        $region55: #{imp_encoder_forward.1} parent=51 // pred_region
          %402 = dma.done %s395, 128
        $region56: #{imp_encoder_forward.1} parent=51 // pred_fallthru
          _
        %s403 = sand.u32 %s28, 1
        %s404 = scalar_lea.sflag [#allocation7], %s403
        %s405 = sand.u32 %s126, 1
        %s406 = smul.addr %s405, 16
        %s407 = scalar_lea.vmem [#allocation6], %s406
        // Predicated region
        $region57: #{imp_encoder_forward.1} parent=51 // pred_check
          %p408 = pneg %p139
        $region58: #{imp_encoder_forward.1} parent=51 // pred_check_branch
          %410 = sbr.rel (%p408) target = $region60
        $region59: #{imp_encoder_forward.1} parent=51 // pred_region
          %411 = dma.done %s404, 256
        $region60: #{imp_encoder_forward.1} parent=51 // pred_fallthru
          _
        %s412 = sand.u32 %s28, 1
        %s413 = scalar_lea.sflag [#allocation7], %s412
        %s414 = sand.u32 %s152, 1
        %s415 = smul.addr %s414, 16
        %s416 = scalar_lea.vmem [#allocation8], %s415
        // Predicated region
        $region61: #{imp_encoder_forward.1} parent=51 // pred_check
          %p417 = pneg %p165
        $region62: #{imp_encoder_forward.1} parent=51 // pred_check_branch
          %419 = sbr.rel (%p417) target = $region64
        $region63: #{imp_encoder_forward.1} parent=51 // pred_region
          %420 = dma.done %s413, 256
        $region64: #{imp_encoder_forward.1} parent=51 // pred_fallthru
          _
        %s421 = sand.u32 %s48, 1
        %s422 = scalar_lea.sflag [#allocation4], %s421
        %s423 = sand.u32 %s48, 1
        %s424 = smul.addr %s423, 8
        %s425 = scalar_lea.vmem [#allocation3], %s424
        %p426 = pneg %p61
        %p427 = pneg %p58
        %p428 = scmp.lt.s32.totalorder %s33, 1
        %s429 = scalar_select %p428, %s33, 1
        %s430 = smul.addr %s429, 4
        %s431 = smul.addr %s430, 4
        %s432 = scalar_lea.vmem %s1, %s431
        %p433 = pneg %p87
        %p434 = pneg %p84
        %p435 = scmp.lt.s32.totalorder %s33, 1
        %s436 = scalar_select %p435, %s33, 1
        %s437 = smul.addr %s436, 4
        %s438 = smul.addr %s437, 4
        %s439 = scalar_lea.vmem %s2, %s438
        %p440 = pneg %p113
        %p441 = pneg %p110
        %s442 = sand.u32 %s28, 1
        %s443 = scalar_lea.sflag [#allocation7], %s442
        %s444 = sand.u32 %s126, 1
        %s445 = smul.addr %s444, 16
        %s446 = scalar_lea.vmem [#allocation6], %s445
        %p447 = pneg %p139
        %p448 = pneg %p136
        %s449 = sand.u32 %s28, 1
        %s450 = scalar_lea.sflag [#allocation7], %s449
        %s451 = sand.u32 %s152, 1
        %s452 = smul.addr %s451, 16
        %s453 = scalar_lea.vmem [#allocation8], %s452
        %p454 = pneg %p165
        %p455 = pneg %p162
        %p456 = scmp.lt.s32.totalorder %s33, 1
        %s457 = scalar_select %p456, %s33, 1
        %s458 = smul.addr %s457, 4
        %s459 = smul.addr %s458, 4
        %s460 = scalar_lea.vmem %s5, %s459
        %p461 = pneg %p191
        %p462 = pneg %p188
        %p463 = scmp.lt.s32.totalorder %s33, 1
        %s464 = scalar_select %p463, %s33, 1
        %s465 = smul.addr %s464, 2
        %s466 = smul.addr %s465, 8
        %s467 = scalar_lea.vmem %s6, %s466
        %p468 = pneg %p217
        %p469 = pneg %p214
        %p470 = scmp.lt.s32.totalorder %s33, 1
        %s471 = scalar_select %p470, %s33, 1
        %s472 = smul.addr %s471, 8
        %s473 = scalar_lea.vmem %s7, %s472
        %p474 = pneg %p243
        %p475 = pneg %p240
        %p476 = pneg %p269
        %p477 = pneg %p266
        %s478 = sand.u32 %s256, 1
        %s479 = scalar_lea.sflag [#allocation5], %s478
        %s480 = sand.u32 %s256, 1
        %s481 = smul.addr %s480, 8
        %s482 = scalar_lea.vmem [#allocation9], %s481
        %p483 = scmp.lt.s32.totalorder %s33, 1
        %s484 = scalar_select %p483, %s33, 1
        %s485 = smul.addr %s484, 4
        %s486 = smul.addr %s485, 4
        %s487 = scalar_lea.vmem %s1, %s486
        %p488 = scmp.lt.s32.totalorder %s33, 1
        %s489 = scalar_select %p488, %s33, 1
        %s490 = smul.addr %s489, 4
        %s491 = smul.addr %s490, 4
        %s492 = scalar_lea.vmem %s2, %s491
        %p493 = scmp.lt.s32.totalorder %s33, 1
        %s494 = scalar_select %p493, %s33, 1
        %s495 = smul.addr %s494, 4
        %s496 = smul.addr %s495, 4
        %s497 = scalar_lea.vmem %s5, %s496
        %p498 = scmp.lt.s32.totalorder %s33, 1
        %s499 = scalar_select %p498, %s33, 1
        %s500 = smul.addr %s499, 2
        %s501 = smul.addr %s500, 8
        %s502 = scalar_lea.vmem %s6, %s501
        %p503 = scmp.lt.s32.totalorder %s33, 1
        %s504 = scalar_select %p503, %s33, 1
        %s505 = smul.addr %s504, 8
        %s506 = scalar_lea.vmem %s7, %s505
        %p508 = scmp.eq.s32.totalorder %s33, 0
        // Predicated region
        $region65: #{imp_encoder_forward.1} parent=51 // pred_check
          %p509 = pneg %p508
        $region66: #{imp_encoder_forward.1} parent=51 // pred_check_branch
          %511 = sbr.rel (%p509) target = $region68
        $region67: #{imp_encoder_forward.1} parent=51 // pred_region
          %v512 = vld [vmem:[%s398] sm:$0xff]
          %vm513 = vcmask 261120
          %514 = vst.msk [vmem:[#allocation2] sm:$0xff] %vm513, %v512
        $region68: #{imp_encoder_forward.1} parent=51 // pred_fallthru
          _
        %v515 = vld [vmem:[#allocation2] sm:$0xff]
        %v516 = vld [vmem:[%s502] sm:$0xff]
        %v517 = vld [vmem:[%s502 + $0x8] sm:$0x1]
        %v518 = vld [vmem:[%s506] sm:$0x3f]
        %v519 = vpack.c.bf16 %v515, %v515
        %v520 = vld [vmem:[%s487] sm:$0xf]
        %v521 = vld [vmem:[%s487 + $0x4] sm:$0xf]
        %v522 = vld [vmem:[%s487 + $0x8] sm:$0xf]
        %v523 = vld [vmem:[%s487 + $0xc] sm:$0xf]
        %v528 = vunpack.c.l.b16 %v520
        %v529 = vunpack.c.l.b16 %v521
        %v530 = vunpack.c.l.b16 %v522
        %v531 = vunpack.c.l.b16 %v523
        %v532 = vpack.c.b16 %v529, %v528
        %v533 = vpack.c.b16 %v531, %v530
        %vm536 = vcmask 261120
        %v538 = vsel %vm536, %v519, 0
        %540 = vmatprep.subr.bf16.mxu0 0
        %541 = vmatpush1.bf16.msra.mxu0 %v532
        %542 = vmatprep.subr.bf16.mxu0 0
        %543 = vmatpush1.bf16.msra.mxu0 %v533
        %544 = vmatprep.subr.bf16.mxu0 0
        %545 = vmatpush1.bf16.msra.mxu0 0
        %546 = vmatprep.subr.bf16.mxu0 0
        %547 = vmatpush1.bf16.msra.mxu0 0
        %548 = vmatprep.subr.bf16.mxu0 0
        %549 = vmatpush1.bf16.msra.mxu0 0
        %550 = vmatprep.subr.bf16.mxu0 0
        %551 = vmatpush1.bf16.msra.mxu0 0
        %552 = vmatprep.subr.bf16.mxu0 0
        %553 = vmatpush1.bf16.msra.mxu0 0
        %554 = vmatprep.subr.bf16.mxu0 0
        %555 = vmatpush1.bf16.msra.mxu0 0
        %556 = vmatprep.subr.bf16.mxu0 0
        %557 = vmatpush1.bf16.msra.mxu0 0
        %558 = vmatprep.subr.bf16.mxu0 0
        %559 = vmatpush1.bf16.msra.mxu0 0
        %560 = vmatprep.subr.bf16.mxu0 0
        %561 = vmatpush1.bf16.msra.mxu0 0
        %562 = vmatprep.subr.bf16.mxu0 0
        %563 = vmatpush1.bf16.msra.mxu0 0
        %564 = vmatprep.subr.bf16.mxu0 0
        %565 = vmatpush1.bf16.msra.mxu0 0
        %566 = vmatprep.subr.bf16.mxu0 0
        %567 = vmatpush1.bf16.msra.mxu0 0
        %568 = vmatprep.subr.bf16.mxu0 0
        %569 = vmatpush1.bf16.msra.mxu0 0
        %570 = vmatprep.subr.bf16.mxu0 0
        %571 = vmatpush1.bf16.msra.mxu0 0
        %572 = vmatprep.mubr.bf16.mxu0 0
        %573 = vmatmul.mubr.bf16.gmra.mrb[0].mxu0 %v538
        %v574 = vpop.f32.mrb[0].mxu0
        %v575 = vadd.f32 0.0, %v574
        %v576 = vpop.f32.mrb[0].mxu0
        %v577 = vpop.f32.mrb[0].mxu0
        %v578 = vpop.f32.mrb[0].mxu0
        %579 = vdwg.mxu0
        %v580 = vlaneseq
        %v581 = vshrl.u32 %v580, 7
        %v582 = vsub.s32 0, %v581
        %v583 = vrot.slane %v516, %v582
        %v584 = vadd.f32 %v575, %v583
        %v585 = vmul.f32 %v584, 0.35355338
        %v586 = vlaneseq
        %v587 = vshrl.u32 %v586, 7
        %v588 = vsub.s32 1, %v587
        %v589 = vrot.slane %v516, %v588
        %591 = vrot.lane.b32.xlu0 %v589, 32
        %v592 = vpop.permute.xlu0 %591
        %v594 = vadd.f32 %v575, %v592
        %v595 = vlaneseq
        %v596 = vshrl.u32 %v595, 7
        %v597 = vsub.s32 2, %v596
        %v598 = vrot.slane %v516, %v597
        %600 = vrot.lane.b32.xlu0 %v598, 64
        %v601 = vpop.permute.xlu0 %600
        %v603 = vadd.f32 %v575, %v601
        %v604 = vpack.c.bf16 %v585, %v585
        %v605 = vpack.c.bf16 %v594, %v594
        %v606 = vpack.c.bf16 %v603, %v603
        %608 = vrot.lane.b32.xlu0 %v605, 96
        %v609 = vpop.permute.xlu0 %608
        %vm610 = vcmask 64512
        %v612 = vsel %vm610, %v604, 0
        %v615 = vsel %vm610, %v609, 0
        %617 = vmatprep.subr.bf16.mxu0 0
        %618 = vmatpush1.bf16.xpose.msra.mxu0 %v615
        %619 = vmatprep.subr.bf16.mxu0 0
        %620 = vmatpush1.bf16.xpose.msra.mxu0 0
        %621 = vmatprep.subr.bf16.mxu0 0
        %622 = vmatpush1.bf16.xpose.msra.mxu0 0
        %623 = vmatprep.subr.bf16.mxu0 0
        %624 = vmatpush1.bf16.xpose.msra.mxu0 0
        %625 = vmatprep.subr.bf16.mxu0 0
        %626 = vmatpush1.bf16.xpose.msra.mxu0 0
        %627 = vmatprep.subr.bf16.mxu0 0
        %628 = vmatpush1.bf16.xpose.msra.mxu0 0
        %629 = vmatprep.subr.bf16.mxu0 0
        %630 = vmatpush1.bf16.xpose.msra.mxu0 0
        %631 = vmatprep.subr.bf16.mxu0 0
        %632 = vmatpush1.bf16.xpose.msra.mxu0 0
        %633 = vmatprep.subr.bf16.mxu0 0
        %634 = vmatpush1.bf16.xpose.msra.mxu0 0
        %635 = vmatprep.subr.bf16.mxu0 0
        %636 = vmatpush1.bf16.xpose.msra.mxu0 0
        %637 = vmatprep.subr.bf16.mxu0 0
        %638 = vmatpush1.bf16.xpose.msra.mxu0 0
        %639 = vmatprep.subr.bf16.mxu0 0
        %640 = vmatpush1.bf16.xpose.msra.mxu0 0
        %641 = vmatprep.subr.bf16.mxu0 0
        %642 = vmatpush1.bf16.xpose.msra.mxu0 0
        %643 = vmatprep.subr.bf16.mxu0 0
        %644 = vmatpush1.bf16.xpose.msra.mxu0 0
        %645 = vmatprep.subr.bf16.mxu0 0
        %646 = vmatpush1.bf16.xpose.msra.mxu0 0
        %647 = vmatprep.subr.bf16.mxu0 0
        %648 = vmatpush1.bf16.xpose.msra.mxu0 0
        %649 = vmatprep.mubr.bf16.mxu0 0
        %650 = vmatmul.mubr.bf16.gmra.mrb[0].mxu0 %v612
        %v651 = vpop.f32.mrb[0].mxu0
        %v652 = vadd.f32 0.0, %v651
        %v653 = vpop.f32.mrb[0].mxu0
        %v654 = vpop.f32.mrb[0].mxu0
        %v655 = vpop.f32.mrb[0].mxu0
        %656 = vdwg.mxu0
        %v657 = vsel %vm610, %v652, -inf
        %658 = vmax.xlane.f32.xlu0 %v657
        %v659 = vpop.xlane.xlu0 %658
        %v660 = vsub.f32 %v652, %v659
        %v661 = vmul.f32 %v660, 1.442695
        %v662 = vpow.pop %v661
        %v663 = vsel %vm610, %v662, 0.0
        %664 = vadd.xlane.f32.xlu0 %v663
        %v665 = vpop.xlane.xlu0 %664
        %v666 = vrcp.pop %v665
        %v667 = vmul.f32 %v662, %v666
        %v668 = vpack.c.bf16 %v667, %v667
        %670 = vrot.lane.b32.xlu0 %v606, 64
        %v671 = vpop.permute.xlu0 %670
        %v673 = vsel %vm610, %v668, 0
        %vm675 = vcmask 1043456
        %v677 = vsel %vm675, %v671, 0
        %679 = vmatprep.subr.bf16.mxu0 0
        %680 = vmatpush1.bf16.msra.mxu0 %v677
        %681 = vmatprep.subr.bf16.mxu0 0
        %682 = vmatpush1.bf16.msra.mxu0 0
        %683 = vmatprep.subr.bf16.mxu0 0
        %684 = vmatpush1.bf16.msra.mxu0 0
        %685 = vmatprep.subr.bf16.mxu0 0
        %686 = vmatpush1.bf16.msra.mxu0 0
        %687 = vmatprep.subr.bf16.mxu0 0
        %688 = vmatpush1.bf16.msra.mxu0 0
        %689 = vmatprep.subr.bf16.mxu0 0
        %690 = vmatpush1.bf16.msra.mxu0 0
        %691 = vmatprep.subr.bf16.mxu0 0
        %692 = vmatpush1.bf16.msra.mxu0 0
        %693 = vmatprep.subr.bf16.mxu0 0
        %694 = vmatpush1.bf16.msra.mxu0 0
        %695 = vmatprep.subr.bf16.mxu0 0
        %696 = vmatpush1.bf16.msra.mxu0 0
        %697 = vmatprep.subr.bf16.mxu0 0
        %698 = vmatpush1.bf16.msra.mxu0 0
        %699 = vmatprep.subr.bf16.mxu0 0
        %700 = vmatpush1.bf16.msra.mxu0 0
        %701 = vmatprep.subr.bf16.mxu0 0
        %702 = vmatpush1.bf16.msra.mxu0 0
        %703 = vmatprep.subr.bf16.mxu0 0
        %704 = vmatpush1.bf16.msra.mxu0 0
        %705 = vmatprep.subr.bf16.mxu0 0
        %706 = vmatpush1.bf16.msra.mxu0 0
        %707 = vmatprep.subr.bf16.mxu0 0
        %708 = vmatpush1.bf16.msra.mxu0 0
        %709 = vmatprep.subr.bf16.mxu0 0
        %710 = vmatpush1.bf16.msra.mxu0 0
        %711 = vmatprep.mubr.bf16.mxu0 0
        %712 = vmatmul.mubr.bf16.gmra.mrb[0].mxu0 %v673
        %v713 = vpop.f32.mrb[0].mxu0
        %v714 = vadd.f32 0.0, %v713
        %v715 = vpop.f32.mrb[0].mxu0
        %v716 = vpop.f32.mrb[0].mxu0
        %v717 = vpop.f32.mrb[0].mxu0
        %718 = vdwg.mxu0
        %720 = vrot.lane.b32.xlu0 %v604, 120
        %v721 = vpop.permute.xlu0 %720
        %722 = vrot.lane.b32.xlu0 %v605, 88
        %v723 = vpop.permute.xlu0 %722
        %v725 = vsel %vm610, %v721, 0
        %v728 = vsel %vm610, %v723, 0
        %730 = vmatprep.subr.bf16.mxu0 0
        %731 = vmatpush1.bf16.xpose.msra.mxu0 %v728
        %732 = vmatprep.subr.bf16.mxu0 0
        %733 = vmatpush1.bf16.xpose.msra.mxu0 0
        %734 = vmatprep.subr.bf16.mxu0 0
        %735 = vmatpush1.bf16.xpose.msra.mxu0 0
        %736 = vmatprep.subr.bf16.mxu0 0
        %737 = vmatpush1.bf16.xpose.msra.mxu0 0
        %738 = vmatprep.subr.bf16.mxu0 0
        %739 = vmatpush1.bf16.xpose.msra.mxu0 0
        %740 = vmatprep.subr.bf16.mxu0 0
        %741 = vmatpush1.bf16.xpose.msra.mxu0 0
        %742 = vmatprep.subr.bf16.mxu0 0
        %743 = vmatpush1.bf16.xpose.msra.mxu0 0
        %744 = vmatprep.subr.bf16.mxu0 0
        %745 = vmatpush1.bf16.xpose.msra.mxu0 0
        %746 = vmatprep.subr.bf16.mxu0 0
        %747 = vmatpush1.bf16.xpose.msra.mxu0 0
        %748 = vmatprep.subr.bf16.mxu0 0
        %749 = vmatpush1.bf16.xpose.msra.mxu0 0
        %750 = vmatprep.subr.bf16.mxu0 0
        %751 = vmatpush1.bf16.xpose.msra.mxu0 0
        %752 = vmatprep.subr.bf16.mxu0 0
        %753 = vmatpush1.bf16.xpose.msra.mxu0 0
        %754 = vmatprep.subr.bf16.mxu0 0
        %755 = vmatpush1.bf16.xpose.msra.mxu0 0
        %756 = vmatprep.subr.bf16.mxu0 0
        %757 = vmatpush1.bf16.xpose.msra.mxu0 0
        %758 = vmatprep.subr.bf16.mxu0 0
        %759 = vmatpush1.bf16.xpose.msra.mxu0 0
        %760 = vmatprep.subr.bf16.mxu0 0
        %761 = vmatpush1.bf16.xpose.msra.mxu0 0
        %762 = vmatprep.mubr.bf16.mxu0 0
        %763 = vmatmul.mubr.bf16.gmra.mrb[0].mxu0 %v725
        %v764 = vpop.f32.mrb[0].mxu0
        %v765 = vadd.f32 0.0, %v764
        %v766 = vpop.f32.mrb[0].mxu0
        %v767 = vpop.f32.mrb[0].mxu0
        %v768 = vpop.f32.mrb[0].mxu0
        %769 = vdwg.mxu0
        %v770 = vsel %vm610, %v765, -inf
        %771 = vmax.xlane.f32.xlu0 %v770
        %v772 = vpop.xlane.xlu0 %771
        %v773 = vsub.f32 %v765, %v772
        %v774 = vmul.f32 %v773, 1.442695
        %v775 = vpow.pop %v774
        %v776 = vsel %vm610, %v775, 0.0
        %777 = vadd.xlane.f32.xlu0 %v776
        %v778 = vpop.xlane.xlu0 %777
        %v779 = vrcp.pop %v778
        %v780 = vmul.f32 %v775, %v779
        %v781 = vpack.c.bf16 %v780, %v780
        %782 = vrot.lane.b32.xlu0 %v606, 56
        %v783 = vpop.permute.xlu0 %782
        %v785 = vsel %vm610, %v781, 0
        %v788 = vsel %vm675, %v783, 0
        %790 = vmatprep.subr.bf16.mxu0 0
        %791 = vmatpush1.bf16.msra.mxu0 %v788
        %792 = vmatprep.subr.bf16.mxu0 0
        %793 = vmatpush1.bf16.msra.mxu0 0
        %794 = vmatprep.subr.bf16.mxu0 0
        %795 = vmatpush1.bf16.msra.mxu0 0
        %796 = vmatprep.subr.bf16.mxu0 0
        %797 = vmatpush1.bf16.msra.mxu0 0
        %798 = vmatprep.subr.bf16.mxu0 0
        %799 = vmatpush1.bf16.msra.mxu0 0
        %800 = vmatprep.subr.bf16.mxu0 0
        %801 = vmatpush1.bf16.msra.mxu0 0
        %802 = vmatprep.subr.bf16.mxu0 0
        %803 = vmatpush1.bf16.msra.mxu0 0
        %804 = vmatprep.subr.bf16.mxu0 0
        %805 = vmatpush1.bf16.msra.mxu0 0
        %806 = vmatprep.subr.bf16.mxu0 0
        %807 = vmatpush1.bf16.msra.mxu0 0
        %808 = vmatprep.subr.bf16.mxu0 0
        %809 = vmatpush1.bf16.msra.mxu0 0
        %810 = vmatprep.subr.bf16.mxu0 0
        %811 = vmatpush1.bf16.msra.mxu0 0
        %812 = vmatprep.subr.bf16.mxu0 0
        %813 = vmatpush1.bf16.msra.mxu0 0
        %814 = vmatprep.subr.bf16.mxu0 0
        %815 = vmatpush1.bf16.msra.mxu0 0
        %816 = vmatprep.subr.bf16.mxu0 0
        %817 = vmatpush1.bf16.msra.mxu0 0
        %818 = vmatprep.subr.bf16.mxu0 0
        %819 = vmatpush1.bf16.msra.mxu0 0
        %820 = vmatprep.subr.bf16.mxu0 0
        %821 = vmatpush1.bf16.msra.mxu0 0
        %822 = vmatprep.mubr.bf16.mxu0 0
        %823 = vmatmul.mubr.bf16.gmra.mrb[0].mxu0 %v785
        %v824 = vpop.f32.mrb[0].mxu0
        %v825 = vadd.f32 0.0, %v824
        %v826 = vpop.f32.mrb[0].mxu0
        %v827 = vpop.f32.mrb[0].mxu0
        %v828 = vpop.f32.mrb[0].mxu0
        %829 = vdwg.mxu0
        %830 = vrot.lane.b32.xlu0 %v604, 112
        %v831 = vpop.permute.xlu0 %830
        %832 = vrot.lane.b32.xlu0 %v605, 80
        %v833 = vpop.permute.xlu0 %832
        %v835 = vsel %vm610, %v831, 0
        %v838 = vsel %vm610, %v833, 0
        %840 = vmatprep.subr.bf16.mxu0 0
        %841 = vmatpush1.bf16.xpose.msra.mxu0 %v838
        %842 = vmatprep.subr.bf16.mxu0 0
        %843 = vmatpush1.bf16.xpose.msra.mxu0 0
        %844 = vmatprep.subr.bf16.mxu0 0
        %845 = vmatpush1.bf16.xpose.msra.mxu0 0
        %846 = vmatprep.subr.bf16.mxu0 0
        %847 = vmatpush1.bf16.xpose.msra.mxu0 0
        %848 = vmatprep.subr.bf16.mxu0 0
        %849 = vmatpush1.bf16.xpose.msra.mxu0 0
        %850 = vmatprep.subr.bf16.mxu0 0
        %851 = vmatpush1.bf16.xpose.msra.mxu0 0
        %852 = vmatprep.subr.bf16.mxu0 0
        %853 = vmatpush1.bf16.xpose.msra.mxu0 0
        %854 = vmatprep.subr.bf16.mxu0 0
        %855 = vmatpush1.bf16.xpose.msra.mxu0 0
        %856 = vmatprep.subr.bf16.mxu0 0
        %857 = vmatpush1.bf16.xpose.msra.mxu0 0
        %858 = vmatprep.subr.bf16.mxu0 0
        %859 = vmatpush1.bf16.xpose.msra.mxu0 0
        %860 = vmatprep.subr.bf16.mxu0 0
        %861 = vmatpush1.bf16.xpose.msra.mxu0 0
        %862 = vmatprep.subr.bf16.mxu0 0
        %863 = vmatpush1.bf16.xpose.msra.mxu0 0
        %864 = vmatprep.subr.bf16.mxu0 0
        %865 = vmatpush1.bf16.xpose.msra.mxu0 0
        %866 = vmatprep.subr.bf16.mxu0 0
        %867 = vmatpush1.bf16.xpose.msra.mxu0 0
        %868 = vmatprep.subr.bf16.mxu0 0
        %869 = vmatpush1.bf16.xpose.msra.mxu0 0
        %870 = vmatprep.subr.bf16.mxu0 0
        %871 = vmatpush1.bf16.xpose.msra.mxu0 0
        %872 = vmatprep.mubr.bf16.mxu0 0
        %873 = vmatmul.mubr.bf16.gmra.mrb[0].mxu0 %v835
        %v874 = vpop.f32.mrb[0].mxu0
        %v875 = vadd.f32 0.0, %v874
        %v876 = vpop.f32.mrb[0].mxu0
        %v877 = vpop.f32.mrb[0].mxu0
        %v878 = vpop.f32.mrb[0].mxu0
        %879 = vdwg.mxu0
        %v880 = vsel %vm610, %v875, -inf
        %881 = vmax.xlane.f32.xlu0 %v880
        %v882 = vpop.xlane.xlu0 %881
        %v883 = vsub.f32 %v875, %v882
        %v884 = vmul.f32 %v883, 1.442695
        %v885 = vpow.pop %v884
        %v886 = vsel %vm610, %v885, 0.0
        %887 = vadd.xlane.f32.xlu0 %v886
        %v888 = vpop.xlane.xlu0 %887
        %v889 = vrcp.pop %v888
        %v890 = vmul.f32 %v885, %v889
        %v891 = vpack.c.bf16 %v890, %v890
        %892 = vrot.lane.b32.xlu0 %v606, 48
        %v893 = vpop.permute.xlu0 %892
        %v895 = vsel %vm610, %v891, 0
        %v898 = vsel %vm675, %v893, 0
        %900 = vmatprep.subr.bf16.mxu0 0
        %901 = vmatpush1.bf16.msra.mxu0 %v898
        %902 = vmatprep.subr.bf16.mxu0 0
        %903 = vmatpush1.bf16.msra.mxu0 0
        %904 = vmatprep.subr.bf16.mxu0 0
        %905 = vmatpush1.bf16.msra.mxu0 0
        %906 = vmatprep.subr.bf16.mxu0 0
        %907 = vmatpush1.bf16.msra.mxu0 0
        %908 = vmatprep.subr.bf16.mxu0 0
        %909 = vmatpush1.bf16.msra.mxu0 0
        %910 = vmatprep.subr.bf16.mxu0 0
        %911 = vmatpush1.bf16.msra.mxu0 0
        %912 = vmatprep.subr.bf16.mxu0 0
        %913 = vmatpush1.bf16.msra.mxu0 0
        %914 = vmatprep.subr.bf16.mxu0 0
        %915 = vmatpush1.bf16.msra.mxu0 0
        %916 = vmatprep.subr.bf16.mxu0 0
        %917 = vmatpush1.bf16.msra.mxu0 0
        %918 = vmatprep.subr.bf16.mxu0 0
        %919 = vmatpush1.bf16.msra.mxu0 0
        %920 = vmatprep.subr.bf16.mxu0 0
        %921 = vmatpush1.bf16.msra.mxu0 0
        %922 = vmatprep.subr.bf16.mxu0 0
        %923 = vmatpush1.bf16.msra.mxu0 0
        %924 = vmatprep.subr.bf16.mxu0 0
        %925 = vmatpush1.bf16.msra.mxu0 0
        %926 = vmatprep.subr.bf16.mxu0 0
        %927 = vmatpush1.bf16.msra.mxu0 0
        %928 = vmatprep.subr.bf16.mxu0 0
        %929 = vmatpush1.bf16.msra.mxu0 0
        %930 = vmatprep.subr.bf16.mxu0 0
        %931 = vmatpush1.bf16.msra.mxu0 0
        %932 = vmatprep.mubr.bf16.mxu0 0
        %933 = vmatmul.mubr.bf16.gmra.mrb[0].mxu0 %v895
        %v934 = vpop.f32.mrb[0].mxu0
        %v935 = vadd.f32 0.0, %v934
        %v936 = vpop.f32.mrb[0].mxu0
        %v937 = vpop.f32.mrb[0].mxu0
        %v938 = vpop.f32.mrb[0].mxu0
        %939 = vdwg.mxu0
        %940 = vrot.lane.b32.xlu0 %v604, 104
        %v941 = vpop.permute.xlu0 %940
        %942 = vrot.lane.b32.xlu0 %v605, 72
        %v943 = vpop.permute.xlu0 %942
        %v945 = vsel %vm610, %v941, 0
        %v948 = vsel %vm610, %v943, 0
        %950 = vmatprep.subr.bf16.mxu0 0
        %951 = vmatpush1.bf16.xpose.msra.mxu0 %v948
        %952 = vmatprep.subr.bf16.mxu0 0
        %953 = vmatpush1.bf16.xpose.msra.mxu0 0
        %954 = vmatprep.subr.bf16.mxu0 0
        %955 = vmatpush1.bf16.xpose.msra.mxu0 0
        %956 = vmatprep.subr.bf16.mxu0 0
        %957 = vmatpush1.bf16.xpose.msra.mxu0 0
        %958 = vmatprep.subr.bf16.mxu0 0
        %959 = vmatpush1.bf16.xpose.msra.mxu0 0
        %960 = vmatprep.subr.bf16.mxu0 0
        %961 = vmatpush1.bf16.xpose.msra.mxu0 0
        %962 = vmatprep.subr.bf16.mxu0 0
        %963 = vmatpush1.bf16.xpose.msra.mxu0 0
        %964 = vmatprep.subr.bf16.mxu0 0
        %965 = vmatpush1.bf16.xpose.msra.mxu0 0
        %966 = vmatprep.subr.bf16.mxu0 0
        %967 = vmatpush1.bf16.xpose.msra.mxu0 0
        %968 = vmatprep.subr.bf16.mxu0 0
        %969 = vmatpush1.bf16.xpose.msra.mxu0 0
        %970 = vmatprep.subr.bf16.mxu0 0
        %971 = vmatpush1.bf16.xpose.msra.mxu0 0
        %972 = vmatprep.subr.bf16.mxu0 0
        %973 = vmatpush1.bf16.xpose.msra.mxu0 0
        %974 = vmatprep.subr.bf16.mxu0 0
        %975 = vmatpush1.bf16.xpose.msra.mxu0 0
        %976 = vmatprep.subr.bf16.mxu0 0
        %977 = vmatpush1.bf16.xpose.msra.mxu0 0
        %978 = vmatprep.subr.bf16.mxu0 0
        %979 = vmatpush1.bf16.xpose.msra.mxu0 0
        %980 = vmatprep.subr.bf16.mxu0 0
        %981 = vmatpush1.bf16.xpose.msra.mxu0 0
        %982 = vmatprep.mubr.bf16.mxu0 0
        %983 = vmatmul.mubr.bf16.gmra.mrb[0].mxu0 %v945
        %v984 = vpop.f32.mrb[0].mxu0
        %v985 = vadd.f32 0.0, %v984
        %v986 = vpop.f32.mrb[0].mxu0
        %v987 = vpop.f32.mrb[0].mxu0
        %v988 = vpop.f32.mrb[0].mxu0
        %989 = vdwg.mxu0
        %v990 = vsel %vm610, %v985, -inf
        %991 = vmax.xlane.f32.xlu0 %v990
        %v992 = vpop.xlane.xlu0 %991
        %v993 = vsub.f32 %v985, %v992
        %v994 = vmul.f32 %v993, 1.442695
        %v995 = vpow.pop %v994
        %v996 = vsel %vm610, %v995, 0.0
        %997 = vadd.xlane.f32.xlu0 %v996
        %v998 = vpop.xlane.xlu0 %997
        %v999 = vrcp.pop %v998
        %v1000 = vmul.f32 %v995, %v999
        %v1001 = vpack.c.bf16 %v1000, %v1000
        %1002 = vrot.lane.b32.xlu0 %v606, 40
        %v1003 = vpop.permute.xlu0 %1002
        %v1005 = vsel %vm610, %v1001, 0
        %v1008 = vsel %vm675, %v1003, 0
        %1010 = vmatprep.subr.bf16.mxu0 0
        %1011 = vmatpush1.bf16.msra.mxu0 %v1008
        %1012 = vmatprep.subr.bf16.mxu0 0
        %1013 = vmatpush1.bf16.msra.mxu0 0
        %1014 = vmatprep.subr.bf16.mxu0 0
        %1015 = vmatpush1.bf16.msra.mxu0 0
        %1016 = vmatprep.subr.bf16.mxu0 0
        %1017 = vmatpush1.bf16.msra.mxu0 0
        %1018 = vmatprep.subr.bf16.mxu0 0
        %1019 = vmatpush1.bf16.msra.mxu0 0
        %1020 = vmatprep.subr.bf16.mxu0 0
        %1021 = vmatpush1.bf16.msra.mxu0 0
        %1022 = vmatprep.subr.bf16.mxu0 0
        %1023 = vmatpush1.bf16.msra.mxu0 0
        %1024 = vmatprep.subr.bf16.mxu0 0
        %1025 = vmatpush1.bf16.msra.mxu0 0
        %1026 = vmatprep.subr.bf16.mxu0 0
        %1027 = vmatpush1.bf16.msra.mxu0 0
        %1028 = vmatprep.subr.bf16.mxu0 0
        %1029 = vmatpush1.bf16.msra.mxu0 0
        %1030 = vmatprep.subr.bf16.mxu0 0
        %1031 = vmatpush1.bf16.msra.mxu0 0
        %1032 = vmatprep.subr.bf16.mxu0 0
        %1033 = vmatpush1.bf16.msra.mxu0 0
        %1034 = vmatprep.subr.bf16.mxu0 0
        %1035 = vmatpush1.bf16.msra.mxu0 0
        %1036 = vmatprep.subr.bf16.mxu0 0
        %1037 = vmatpush1.bf16.msra.mxu0 0
        %1038 = vmatprep.subr.bf16.mxu0 0
        %1039 = vmatpush1.bf16.msra.mxu0 0
        %1040 = vmatprep.subr.bf16.mxu0 0
        %1041 = vmatpush1.bf16.msra.mxu0 0
        %1042 = vmatprep.mubr.bf16.mxu0 0
        %1043 = vmatmul.mubr.bf16.gmra.mrb[0].mxu0 %v1005
        %v1044 = vpop.f32.mrb[0].mxu0
        %v1045 = vadd.f32 0.0, %v1044
        %v1046 = vpop.f32.mrb[0].mxu0
        %v1047 = vpop.f32.mrb[0].mxu0
        %v1048 = vpop.f32.mrb[0].mxu0
        %1049 = vdwg.mxu0
        %1051 = vrot.lane.b32.xlu0 %v825, 8
        %v1052 = vpop.permute.xlu0 %1051
        %1055 = vrot.lane.b32.xlu0 %v935, 16
        %v1056 = vpop.permute.xlu0 %1055
        %1059 = vrot.lane.b32.xlu0 %v1045, 24
        %v1060 = vpop.permute.xlu0 %1059
        %v1062 = vsel %vm610, %v714, %v1052
        %vm1063 = vcmask 130048
        %v1064 = vsel %vm1063, %v1062, %v1056
        %vm1065 = vcmask 195584
        %v1066 = vsel %vm1065, %v1064, %v1060
        %v1067 = vpack.c.bf16 %v1066, %v1066
        %v1068 = vld [vmem:[%s492] sm:$0xf]
        %v1069 = vld [vmem:[%s492 + $0x4] sm:$0xf]
        %v1070 = vld [vmem:[%s492 + $0x8] sm:$0xf]
        %v1071 = vld [vmem:[%s492 + $0xc] sm:$0xf]
        %v1072 = vlaneseq
        %v1073 = vshrl.u32 %v1072, 7
        %v1074 = vsub.s32 3, %v1073
        %v1075 = vrot.slane %v516, %v1074
        %v1080 = vunpack.c.l.b16 %v1068
        %v1081 = vunpack.c.l.b16 %v1069
        %v1082 = vunpack.c.l.b16 %v1070
        %v1083 = vunpack.c.l.b16 %v1071
        %v1084 = vpack.c.b16 %v1081, %v1080
        %v1085 = vpack.c.b16 %v1083, %v1082
        %v1089 = vsel %vm536, %v1067, 0
        %1091 = vmatprep.subr.bf16.mxu0 0
        %1092 = vmatpush1.bf16.msra.mxu0 %v1084
        %1093 = vmatprep.subr.bf16.mxu0 0
        %1094 = vmatpush1.bf16.msra.mxu0 %v1085
        %1095 = vmatprep.subr.bf16.mxu0 0
        %1096 = vmatpush1.bf16.msra.mxu0 0
        %1097 = vmatprep.subr.bf16.mxu0 0
        %1098 = vmatpush1.bf16.msra.mxu0 0
        %1099 = vmatprep.subr.bf16.mxu0 0
        %1100 = vmatpush1.bf16.msra.mxu0 0
        %1101 = vmatprep.subr.bf16.mxu0 0
        %1102 = vmatpush1.bf16.msra.mxu0 0
        %1103 = vmatprep.subr.bf16.mxu0 0
        %1104 = vmatpush1.bf16.msra.mxu0 0
        %1105 = vmatprep.subr.bf16.mxu0 0
        %1106 = vmatpush1.bf16.msra.mxu0 0
        %1107 = vmatprep.subr.bf16.mxu0 0
        %1108 = vmatpush1.bf16.msra.mxu0 0
        %1109 = vmatprep.subr.bf16.mxu0 0
        %1110 = vmatpush1.bf16.msra.mxu0 0
        %1111 = vmatprep.subr.bf16.mxu0 0
        %1112 = vmatpush1.bf16.msra.mxu0 0
        %1113 = vmatprep.subr.bf16.mxu0 0
        %1114 = vmatpush1.bf16.msra.mxu0 0
        %1115 = vmatprep.subr.bf16.mxu0 0
        %1116 = vmatpush1.bf16.msra.mxu0 0
        %1117 = vmatprep.subr.bf16.mxu0 0
        %1118 = vmatpush1.bf16.msra.mxu0 0
        %1119 = vmatprep.subr.bf16.mxu0 0
        %1120 = vmatpush1.bf16.msra.mxu0 0
        %1121 = vmatprep.subr.bf16.mxu0 0
        %1122 = vmatpush1.bf16.msra.mxu0 0
        %1123 = vmatprep.mubr.bf16.mxu0 0
        %1124 = vmatmul.mubr.bf16.gmra.mrb[0].mxu0 %v1089
        %v1125 = vpop.f32.mrb[0].mxu0
        %v1126 = vadd.f32 %v1075, %v1125
        %v1127 = vpop.f32.mrb[0].mxu0
        %v1128 = vpop.f32.mrb[0].mxu0
        %v1129 = vpop.f32.mrb[0].mxu0
        %1130 = vdwg.mxu0
        %v1131 = vpack.c.bf16 %v1126, %v1126
        %v1132 = vld [vmem:[%s407] sm:$0xf]
        %v1133 = vld [vmem:[%s407 + $0x4] sm:$0xf]
        %v1134 = vld [vmem:[%s407 + $0x8] sm:$0xf]
        %v1135 = vld [vmem:[%s407 + $0xc] sm:$0xf]
        %v1136 = vlaneseq
        %v1137 = vshrl.u32 %v1136, 7
        %v1138 = vsub.s32 0, %v1137
        %v1139 = vrot.slane %v518, %v1138
        %v1144 = vunpack.c.l.b16 %v1132
        %v1145 = vunpack.c.l.b16 %v1133
        %v1146 = vunpack.c.l.b16 %v1134
        %v1147 = vunpack.c.l.b16 %v1135
        %v1148 = vpack.c.b16 %v1145, %v1144
        %v1149 = vpack.c.b16 %v1147, %v1146
        %v1153 = vsel %vm536, %v1131, 0
        %1155 = vmatprep.subr.bf16.mxu0 0
        %1156 = vmatpush1.bf16.msra.mxu0 %v1148
        %1157 = vmatprep.subr.bf16.mxu0 0
        %1158 = vmatpush1.bf16.msra.mxu0 %v1149
        %1159 = vmatprep.subr.bf16.mxu0 0
        %1160 = vmatpush1.bf16.msra.mxu0 0
        %1161 = vmatprep.subr.bf16.mxu0 0
        %1162 = vmatpush1.bf16.msra.mxu0 0
        %1163 = vmatprep.subr.bf16.mxu0 0
        %1164 = vmatpush1.bf16.msra.mxu0 0
        %1165 = vmatprep.subr.bf16.mxu0 0
        %1166 = vmatpush1.bf16.msra.mxu0 0
        %1167 = vmatprep.subr.bf16.mxu0 0
        %1168 = vmatpush1.bf16.msra.mxu0 0
        %1169 = vmatprep.subr.bf16.mxu0 0
        %1170 = vmatpush1.bf16.msra.mxu0 0
        %1171 = vmatprep.subr.bf16.mxu0 0
        %1172 = vmatpush1.bf16.msra.mxu0 0
        %1173 = vmatprep.subr.bf16.mxu0 0
        %1174 = vmatpush1.bf16.msra.mxu0 0
        %1175 = vmatprep.subr.bf16.mxu0 0
        %1176 = vmatpush1.bf16.msra.mxu0 0
        %1177 = vmatprep.subr.bf16.mxu0 0
        %1178 = vmatpush1.bf16.msra.mxu0 0
        %1179 = vmatprep.subr.bf16.mxu0 0
        %1180 = vmatpush1.bf16.msra.mxu0 0
        %1181 = vmatprep.subr.bf16.mxu0 0
        %1182 = vmatpush1.bf16.msra.mxu0 0
        %1183 = vmatprep.subr.bf16.mxu0 0
        %1184 = vmatpush1.bf16.msra.mxu0 0
        %1185 = vmatprep.subr.bf16.mxu0 0
        %1186 = vmatpush1.bf16.msra.mxu0 0
        %1187 = vmatprep.mubr.bf16.mxu0 0
        %1188 = vmatmul.mubr.bf16.gmra.mrb[0].mxu0 %v1153
        %v1189 = vpop.f32.mrb[0].mxu0
        %v1190 = vadd.f32 %v1139, %v1189
        %v1191 = vpop.f32.mrb[0].mxu0
        %v1192 = vpop.f32.mrb[0].mxu0
        %v1193 = vpop.f32.mrb[0].mxu0
        %1194 = vdwg.mxu0
        %v1195 = vsel %vm536, %v1190, 0.0
        %1196 = vadd.xlane.f32.xlu0 %v1195
        %v1197 = vpop.xlane.xlu0 %1196
        %v1198 = vrcp.pop 32.0
        %v1199 = vmul.f32 %v1197, %v1198
        %v1200 = vsub.f32 %v1190, %v1199
        %v1201 = vmul.f32 %v1200, %v1200
        %v1202 = vsel %vm536, %v1201, 0.0
        %1203 = vadd.xlane.f32.xlu0 %v1202
        %v1204 = vpop.xlane.xlu0 %1203
        %v1205 = vmul.f32 %v1204, %v1198
        %v1206 = vadd.f32 %v1205, 1e-05
        %v1207 = vrsqrt.pop %v1206
        %v1208 = vmul.f32 %v1200, %v1207
        %v1209 = vlaneseq
        %v1210 = vshrl.u32 %v1209, 7
        %v1211 = vsub.s32 1, %v1210
        %v1212 = vrot.slane %v518, %v1211
        %v1213 = vmul.f32 %v1208, %v1212
        %v1214 = vlaneseq
        %v1215 = vshrl.u32 %v1214, 7
        %v1216 = vsub.s32 2, %v1215
        %v1217 = vrot.slane %v518, %v1216
        %v1218 = vadd.f32 %v1213, %v1217
        %v1219 = vmax.f32 %v1218, 0.0
        %v1220 = vpack.c.bf16 %v1219, %v1219
        %v1221 = vld [vmem:[%s416] sm:$0xf]
        %v1222 = vld [vmem:[%s416 + $0x4] sm:$0xf]
        %v1223 = vld [vmem:[%s416 + $0x8] sm:$0xf]
        %v1224 = vld [vmem:[%s416 + $0xc] sm:$0xf]
        %v1225 = vlaneseq
        %v1226 = vshrl.u32 %v1225, 7
        %v1227 = vsub.s32 3, %v1226
        %v1228 = vrot.slane %v518, %v1227
        %v1233 = vunpack.c.l.b16 %v1221
        %v1234 = vunpack.c.l.b16 %v1222
        %v1235 = vunpack.c.l.b16 %v1223
        %v1236 = vunpack.c.l.b16 %v1224
        %v1237 = vpack.c.b16 %v1234, %v1233
        %v1238 = vpack.c.b16 %v1236, %v1235
        %v1242 = vsel %vm536, %v1220, 0
        %1244 = vmatprep.subr.bf16.mxu0 0
        %1245 = vmatpush1.bf16.msra.mxu0 %v1237
        %1246 = vmatprep.subr.bf16.mxu0 0
        %1247 = vmatpush1.bf16.msra.mxu0 %v1238
        %1248 = vmatprep.subr.bf16.mxu0 0
        %1249 = vmatpush1.bf16.msra.mxu0 0
        %1250 = vmatprep.subr.bf16.mxu0 0
        %1251 = vmatpush1.bf16.msra.mxu0 0
        %1252 = vmatprep.subr.bf16.mxu0 0
        %1253 = vmatpush1.bf16.msra.mxu0 0
        %1254 = vmatprep.subr.bf16.mxu0 0
        %1255 = vmatpush1.bf16.msra.mxu0 0
        %1256 = vmatprep.subr.bf16.mxu0 0
        %1257 = vmatpush1.bf16.msra.mxu0 0
        %1258 = vmatprep.subr.bf16.mxu0 0
        %1259 = vmatpush1.bf16.msra.mxu0 0
        %1260 = vmatprep.subr.bf16.mxu0 0
        %1261 = vmatpush1.bf16.msra.mxu0 0
        %1262 = vmatprep.subr.bf16.mxu0 0
        %1263 = vmatpush1.bf16.msra.mxu0 0
        %1264 = vmatprep.subr.bf16.mxu0 0
        %1265 = vmatpush1.bf16.msra.mxu0 0
        %1266 = vmatprep.subr.bf16.mxu0 0
        %1267 = vmatpush1.bf16.msra.mxu0 0
        %1268 = vmatprep.subr.bf16.mxu0 0
        %1269 = vmatpush1.bf16.msra.mxu0 0
        %1270 = vmatprep.subr.bf16.mxu0 0
        %1271 = vmatpush1.bf16.msra.mxu0 0
        %1272 = vmatprep.subr.bf16.mxu0 0
        %1273 = vmatpush1.bf16.msra.mxu0 0
        %1274 = vmatprep.subr.bf16.mxu0 0
        %1275 = vmatpush1.bf16.msra.mxu0 0
        %1276 = vmatprep.mubr.bf16.mxu0 0
        %1277 = vmatmul.mubr.bf16.gmra.mrb[0].mxu0 %v1242
        %v1278 = vpop.f32.mrb[0].mxu0
        %v1279 = vadd.f32 %v1228, %v1278
        %v1280 = vpop.f32.mrb[0].mxu0
        %v1281 = vpop.f32.mrb[0].mxu0
        %v1282 = vpop.f32.mrb[0].mxu0
        %1283 = vdwg.mxu0
        %v1284 = vsel %vm536, %v1279, 0.0
        %1285 = vadd.xlane.f32.xlu0 %v1284
        %v1286 = vpop.xlane.xlu0 %1285
        %v1287 = vmul.f32 %v1286, %v1198
        %v1288 = vsub.f32 %v1279, %v1287
        %v1289 = vmul.f32 %v1288, %v1288
        %v1290 = vsel %vm536, %v1289, 0.0
        %1291 = vadd.xlane.f32.xlu0 %v1290
        %v1292 = vpop.xlane.xlu0 %1291
        %v1293 = vmul.f32 %v1292, %v1198
        %v1294 = vadd.f32 %v1293, 1e-05
        %v1295 = vrsqrt.pop %v1294
        %v1296 = vmul.f32 %v1288, %v1295
        %v1297 = vlaneseq
        %v1298 = vshrl.u32 %v1297, 7
        %v1299 = vsub.s32 4, %v1298
        %v1300 = vrot.slane %v518, %v1299
        %v1301 = vmul.f32 %v1296, %v1300
        %v1302 = vlaneseq
        %v1303 = vshrl.u32 %v1302, 7
        %v1304 = vsub.s32 5, %v1303
        %v1305 = vrot.slane %v518, %v1304
        %v1306 = vadd.f32 %v1301, %v1305
        %v1307 = vmax.f32 %v1306, 0.0
        %v1308 = vpack.c.bf16 %v1307, %v1307
        %v1309 = vld [vmem:[%s497] sm:$0xf]
        %v1310 = vld [vmem:[%s497 + $0x4] sm:$0xf]
        %v1311 = vld [vmem:[%s497 + $0x8] sm:$0xf]
        %v1312 = vld [vmem:[%s497 + $0xc] sm:$0xf]
        %v1313 = vlaneseq
        %v1314 = vshrl.u32 %v1313, 7
        %v1315 = vsub.s32 4, %v1314
        %v1316 = vrot.slane %v516, %v1315
        %v1321 = vunpack.c.l.b16 %v1309
        %v1322 = vunpack.c.l.b16 %v1310
        %v1323 = vunpack.c.l.b16 %v1311
        %v1324 = vunpack.c.l.b16 %v1312
        %v1325 = vpack.c.b16 %v1322, %v1321
        %v1326 = vpack.c.b16 %v1324, %v1323
        %v1330 = vsel %vm536, %v1308, 0
        %1332 = vmatprep.subr.bf16.mxu0 0
        %1333 = vmatpush1.bf16.msra.mxu0 %v1325
        %1334 = vmatprep.subr.bf16.mxu0 0
        %1335 = vmatpush1.bf16.msra.mxu0 %v1326
        %1336 = vmatprep.subr.bf16.mxu0 0
        %1337 = vmatpush1.bf16.msra.mxu0 0
        %1338 = vmatprep.subr.bf16.mxu0 0
        %1339 = vmatpush1.bf16.msra.mxu0 0
        %1340 = vmatprep.subr.bf16.mxu0 0
        %1341 = vmatpush1.bf16.msra.mxu0 0
        %1342 = vmatprep.subr.bf16.mxu0 0
        %1343 = vmatpush1.bf16.msra.mxu0 0
        %1344 = vmatprep.subr.bf16.mxu0 0
        %1345 = vmatpush1.bf16.msra.mxu0 0
        %1346 = vmatprep.subr.bf16.mxu0 0
        %1347 = vmatpush1.bf16.msra.mxu0 0
        %1348 = vmatprep.subr.bf16.mxu0 0
        %1349 = vmatpush1.bf16.msra.mxu0 0
        %1350 = vmatprep.subr.bf16.mxu0 0
        %1351 = vmatpush1.bf16.msra.mxu0 0
        %1352 = vmatprep.subr.bf16.mxu0 0
        %1353 = vmatpush1.bf16.msra.mxu0 0
        %1354 = vmatprep.subr.bf16.mxu0 0
        %1355 = vmatpush1.bf16.msra.mxu0 0
        %1356 = vmatprep.subr.bf16.mxu0 0
        %1357 = vmatpush1.bf16.msra.mxu0 0
        %1358 = vmatprep.subr.bf16.mxu0 0
        %1359 = vmatpush1.bf16.msra.mxu0 0
        %1360 = vmatprep.subr.bf16.mxu0 0
        %1361 = vmatpush1.bf16.msra.mxu0 0
        %1362 = vmatprep.subr.bf16.mxu0 0
        %1363 = vmatpush1.bf16.msra.mxu0 0
        %1364 = vmatprep.mubr.bf16.mxu0 0
        %1365 = vmatmul.mubr.bf16.gmra.mrb[0].mxu0 %v1330
        %v1366 = vpop.f32.mrb[0].mxu0
        %v1367 = vadd.f32 %v1316, %v1366
        %v1368 = vpop.f32.mrb[0].mxu0
        %v1369 = vpop.f32.mrb[0].mxu0
        %v1370 = vpop.f32.mrb[0].mxu0
        %1371 = vdwg.mxu0
        %v1372 = vadd.f32 %v1367, %v1126
        %v1373 = vsel %vm536, %v1372, 0.0
        %1374 = vadd.xlane.f32.xlu0 %v1373
        %v1375 = vpop.xlane.xlu0 %1374
        %v1376 = vmul.f32 %v1375, %v1198
        %v1377 = vsub.f32 %v1372, %v1376
        %v1378 = vmul.f32 %v1377, %v1377
        %v1379 = vsel %vm536, %v1378, 0.0
        %1380 = vadd.xlane.f32.xlu0 %v1379
        %v1381 = vpop.xlane.xlu0 %1380
        %v1382 = vmul.f32 %v1381, %v1198
        %v1383 = vadd.f32 %v1382, 1e-05
        %v1384 = vrsqrt.pop %v1383
        %v1385 = vmul.f32 %v1377, %v1384
        %v1386 = vlaneseq
        %v1387 = vshrl.u32 %v1386, 7
        %v1388 = vsub.s32 5, %v1387
        %v1389 = vrot.slane %v516, %v1388
        %v1390 = vmul.f32 %v1385, %v1389
        %v1391 = vlaneseq
        %v1392 = vshrl.u32 %v1391, 7
        %v1393 = vsub.s32 6, %v1392
        %v1394 = vrot.slane %v516, %v1393
        %v1395 = vadd.f32 %v1390, %v1394
        %v1396 = vsel %vm536, %v1395, 0.0
        %1397 = vadd.xlane.f32.xlu0 %v1396
        %v1398 = vpop.xlane.xlu0 %1397
        %v1399 = vmul.f32 %v1398, %v1198
        %v1400 = vsub.f32 %v1395, %v1399
        %v1401 = vmul.f32 %v1400, %v1400
        %v1402 = vsel %vm536, %v1401, 0.0
        %1403 = vadd.xlane.f32.xlu0 %v1402
        %v1404 = vpop.xlane.xlu0 %1403
        %v1405 = vmul.f32 %v1404, %v1198
        %v1406 = vadd.f32 %v1405, 1e-05
        %v1407 = vrsqrt.pop %v1406
        %v1408 = vmul.f32 %v1400, %v1407
        %v1409 = vlaneseq
        %v1410 = vshrl.u32 %v1409, 7
        %v1411 = vsub.s32 7, %v1410
        %v1412 = vrot.slane %v516, %v1411
        %v1413 = vmul.f32 %v1408, %v1412
        %v1414 = vlaneseq
        %v1415 = vshrl.u32 %v1414, 7
        %v1416 = vsub.s32 0, %v1415
        %v1417 = vrot.slane %v517, %v1416
        %v1418 = vadd.f32 %v1413, %v1417
        %1419 = vst.msk [vmem:[#allocation2] sm:$0xff] %vm536, %v1418
        %p1420 = scmp.eq.s32.totalorder %s33, 1
        // Predicated region
        $region69: #{imp_encoder_forward.1} parent=51 // pred_check
          %p1421 = pneg %p1420
        $region70: #{imp_encoder_forward.1} parent=51 // pred_check_branch
          %1423 = sbr.rel (%p1421) target = $region72
        $region71: #{imp_encoder_forward.1} parent=51 // pred_region
          %1424 = vst.msk [vmem:[%s482] sm:$0xff] %vm536, %v1418
        $region72: #{imp_encoder_forward.1} parent=51 // pred_fallthru
          _
        %s1425 = sand.u32 %s256, 1
        %s1426 = scalar_lea.sflag [#allocation5], %s1425
        %s1427 = sand.u32 %s256, 1
        %s1428 = smul.addr %s1427, 8
        %s1429 = scalar_lea.vmem [#allocation9], %s1428
        // Predicated region
        $region73: #{imp_encoder_forward.1} parent=51 // pred_check
          %p1430 = pneg %p266
        $region74: #{imp_encoder_forward.1} parent=51 // pred_check_branch
          %1432 = sbr.rel (%p1430) target = $region76
        $region75: #{imp_encoder_forward.1} parent=51 // pred_region
          %s1434 = ssub.s32 128, 128
          %1435 = vsyncadd %s1426, %s1434
          %s1436 = smul.addr %s32, 128
          %s1437 = scalar_lea.hbm %s8, %s1436
          %s1439 = sshll.u32 %s1429, 4
          %s1440 = int_to_ptr.vmem [resolvable:$true] %s1439
          %1442 = dma.vmem_to_hbm [thread:$0]  %s1440, 128, %s1437, %s1426
        $region76: #{imp_encoder_forward.1} parent=51 // pred_fallthru
          _
      $region52: #{imp_encoder_forward.1} parent=5 // pred_fallthru
        _
      %p1443 = scmp.le.s32.totalorder 2, %s23
      // Predicated region
      $region77: #{imp_encoder_forward.1} parent=5 // pred_check
        %p1444 = pneg %p1443
      $region78: #{imp_encoder_forward.1} parent=5 // pred_check_branch
        %1446 = sbr.rel (%p1444) target = $region80
      $region79: #{imp_encoder_forward.1} parent=5 // pred_region
        %s1447 = ssub.s32 %s23, 2
        // Predicated region
        $region81: #{imp_encoder_forward.1} parent=79 // pred_check
          %p1448 = pneg %p272
        $region82: #{imp_encoder_forward.1} parent=79 // pred_check_branch
          %1450 = sbr.rel (%p1448) target = $region84
        $region83: #{imp_encoder_forward.1} parent=79 // pred_region
          %s1451 = sand.u32 %s257, 1
          %s1452 = scalar_lea.sflag [#allocation5], %s1451
          %s1453 = sand.u32 %s257, 1
          %s1454 = smul.addr %s1453, 8
          %s1455 = scalar_lea.vmem [#allocation9], %s1454
          %1456 = dma.done %s1452, 128
        $region84: #{imp_encoder_forward.1} parent=79 // pred_fallthru
          _
      $region80: #{imp_encoder_forward.1} parent=5 // pred_fallthru
        _
    $region6: #{imp_encoder_forward.1} parent=1 // loop_footer
      %s27 = sadd.s32 1, %s23
    $region7: #{imp_encoder_forward.1} parent=1 // loop_footer_branch
      %22 = sbr.rel target = $region3
    $region8: #{imp_encoder_forward.1} parent=1 // loop_exit
      _
    %1457 = vsyncpa [#allocation4], 1
    %s1458 = scalar_lea.sflag [#allocation4], 1
    %1459 = vsyncpa %s1458, 1
    %1460 = vsyncpa [#allocation7], 1
    %s1461 = scalar_lea.sflag [#allocation7], 1
    %1462 = vsyncpa %s1461, 1
    %1463 = vsyncpa [#allocation5], 1
    %s1464 = scalar_lea.sflag [#allocation5], 1
    %1465 = vsyncpa %s1464, 1

</llo_original>
